<compile_context>
chip_gen: v5e
topology: v5e:2x2
jax: 0.10.0
libtpu: 0.0.40
codegen_flags: <defaults>
</compile_context>

<pallas_src>
from functools import partial

import jax
import jax.numpy as jnp
from jax.experimental import pallas as pl
from jax.experimental.pallas import tpu as pltpu


def _cate_atte_kernel(x_ref, wqkv_ref, bqkv_ref, wo_ref, bo_ref,
                      gamma_ref, beta_ref, o_ref, *, n_heads, eps):
    """One batch-block per grid step.

    x_ref:     (bb, L, D)   input slice, lane-dense (L, D) rows
    wqkv_ref:  (D, 3D)      [Wq | Wk | Wv] packed -> one wide projection matmul
    bqkv_ref:  (1, 3D)      packed projection biases
    wo_ref:    (D, D)       output projection (x @ Wo form)
    bo_ref:    (1, D)       output projection bias
    gamma_ref: (L, 1)       LayerNorm weight (varies along the L/sublane axis)
    beta_ref:  (L, 1)       LayerNorm bias
    o_ref:     (bb, L, D)   output slice, lane-dense; wrapper transposes back to (B, D, L)
    """
    bb, L, D = x_ref.shape
    H = n_heads
    E = D // H
    scale = 1.0 / float(E) ** 0.5

    # Rows = (batch, position).  Sublane-aligned concat (L % 8 == 0), no lane relayout.
    xr = x_ref[0] if bb == 1 else jnp.concatenate(
        [x_ref[b] for b in range(bb)], axis=0)                            # (bb*L, D)

    # Fused Q/K/V projection: one wide matmul (N = 3D lanes), f32 accumulation.
    qkv = jnp.dot(xr, wqkv_ref[...],
                  preferred_element_type=jnp.float32) + bqkv_ref[...]     # (bb*L, 3D)

    # --- attention -------------------------------------------------------------------
    # One (L, 3D) -> (3D, L) transpose per batch puts every per-head Q/K/V block on an
    # 8-row sublane boundary, so the head split below is free vreg selection.
    per_batch = []
    for b in range(bb):                       # bb is tiny (<=2); trace-time loop is fine
        qkvT = qkv[b * L:(b + 1) * L, :].T                                # (3D, L)
        outsT = []
        for h in range(H):
            qT = qkvT[h * E:(h + 1) * E, :]                               # (E, L)
            kT = qkvT[D + h * E:D + (h + 1) * E, :]                       # (E, L)
            vT = qkvT[2 * D + h * E:2 * D + (h + 1) * E, :]               # (E, L)
            # scores[q, k] = sum_e Q[q, e] * K[k, e]   (trans_a matmul on the MXU)
            s = jax.lax.dot_general(
                qT, kT, (((0,), (0,)), ((), ())),
                preferred_element_type=jnp.float32) * scale               # (L, L)
            s = s - jnp.max(s, axis=-1, keepdims=True)
            p = jnp.exp(s)
            a = p * pl.reciprocal(jnp.sum(p, axis=-1, keepdims=True), approx=True)
            # outT[e, q] = sum_k V[k, e] * A[q, k]     (trans_b matmul)
            outsT.append(jax.lax.dot_general(
                vT, a, (((1,), (1,)), ((), ())),
                preferred_element_type=jnp.float32))                      # (E, L)
        # Heads stacked along sublanes -> (D, L); one transpose back -> (L, D) with
        # columns ordered (h, e), matching the PyTorch .view(B, L, -1).
        per_batch.append(jnp.concatenate(outsT, axis=0).T)                # (L, D)

    o_cat = per_batch[0] if bb == 1 else jnp.concatenate(per_batch, axis=0)  # (bb*L, D)

    # Output projection: ONE matmul over the folded batch, then the gated residual.
    out = jnp.dot(o_cat, wo_ref[...],
                  preferred_element_type=jnp.float32) + bo_ref[...]       # (bb*L, D)
    y = xr * out                                                          # (bb*L, D)

    # --- LayerNorm over the position axis L, computed in the lane-dense (L, D) layout --
    g = gamma_ref[...]                                                    # (L, 1), hoisted
    bt = beta_ref[...]                                                    # (L, 1)
    for b in range(bb):
        y_b = y[b * L:(b + 1) * L, :]                                     # (L, D), sublane slice
        mean = jnp.mean(y_b, axis=0, keepdims=True)                       # (1, D)
        c = y_b - mean
        var = jnp.mean(c * c, axis=0, keepdims=True)                      # stable two-pass variance
        ynorm = c * jax.lax.rsqrt(var + eps)
        o_ref[b] = ynorm * g + bt                                         # lane-dense (L, D) store


def cate_atte_pallas(x, w_q, b_q, w_k, b_k, w_v, b_v, w_o, b_o, gamma, beta,
                     *, n_heads=6, eps=1e-5, num_batch_blocks=None):
    """x: (B, d_model, L) float32. Returns (B, d_model, L), matching the PyTorch output."""
    B, D, L = x.shape
    assert D % n_heads == 0

    # Single grid step by default on ALL generations (overhead-bound kernel); the
    # multi-step / 2-TC split is opt-in via num_batch_blocks.
    nb = 1 if num_batch_blocks is None else num_batch_blocks
    if nb < 1 or B % nb != 0:
        nb = 1
    bb = B // nb

    # Layout plumbing in the wrapper (tiny arrays): lane-dense (B, L, D) in, (B, L, D) out.
    x_ld = jnp.transpose(x, (0, 2, 1))                                    # (B, L, D)

    # Parameter packing (plain JAX, trace-time only).
    wqkv = jnp.concatenate([w_q, w_k, w_v], axis=1)                       # (D, 3D)
    bqkv = jnp.concatenate([b_q, b_k, b_v]).reshape(1, 3 * D)             # (1, 3D)
    bo2 = b_o.reshape(1, D)                                               # (1, D)
    gamma2 = gamma.reshape(L, 1)                                          # (L, 1)
    beta2 = beta.reshape(L, 1)                                            # (L, 1)

    kernel = partial(_cate_atte_kernel, n_heads=n_heads, eps=eps)
    rep2 = lambda i: (0, 0)

    out_ld = pl.pallas_call(
        kernel,
        out_shape=jax.ShapeDtypeStruct((B, L, D), jnp.float32),
        grid_spec=pltpu.PrefetchScalarGridSpec(
            num_scalar_prefetch=0,
            grid=(nb,),
            in_specs=[
                pl.BlockSpec((bb, L, D), lambda i: (i, 0, 0)),            # x (lane-dense rows)
                pl.BlockSpec((D, 3 * D), rep2),                           # Wqkv
                pl.BlockSpec((1, 3 * D), rep2),                           # bqkv
                pl.BlockSpec((D, D), rep2),                               # Wo
                pl.BlockSpec((1, D), rep2),                               # bo
                pl.BlockSpec((L, 1), rep2),                               # gamma
                pl.BlockSpec((L, 1), rep2),                               # beta
            ],
            out_specs=pl.BlockSpec((bb, L, D), lambda i: (i, 0, 0)),
        ),
        compiler_params=pltpu.CompilerParams(
            dimension_semantics=("parallel",)),
    )(x_ld, wqkv, bqkv, w_o, bo2, gamma2, beta2)

    return jnp.transpose(out_ld, (0, 2, 1))                               # (B, D, L)


def cate_atte_ref(x, w_q, b_q, w_k, b_k, w_v, b_v, w_o, b_o, gamma, beta,
                  *, n_heads=6, eps=1e-5):
    """Pure-JAX fp32 reference mirroring the PyTorch forward (eval mode)."""
    hp = jax.lax.Precision.HIGHEST
    B, D, L = x.shape
    E = D // n_heads
    xT = jnp.transpose(x, (0, 2, 1))                                      # (B, L, D)
    q = (jnp.einsum("bld,de->ble", xT, w_q, precision=hp) + b_q).reshape(B, L, n_heads, E)
    k = (jnp.einsum("bld,de->ble", xT, w_k, precision=hp) + b_k).reshape(B, L, n_heads, E)
    v = (jnp.einsum("bld,de->ble", xT, w_v, precision=hp) + b_v).reshape(B, L, n_heads, E)
    scores = jnp.einsum("blhe,bshe->bhls", q, k, precision=hp) / jnp.sqrt(float(E))
    a = jax.nn.softmax(scores, axis=-1)
    o = jnp.einsum("bhls,bshd->blhd", a, v, precision=hp).reshape(B, L, D)
    out = jnp.einsum("bld,de->ble", o, w_o, precision=hp) + b_o
    y = xT * out                                                          # (B, L, D)
    yT = jnp.transpose(y, (0, 2, 1))                                      # (B, D, L)
    mean = jnp.mean(yT, axis=-1, keepdims=True)
    var = jnp.mean((yT - mean) ** 2, axis=-1, keepdims=True)
    return (yT - mean) * jax.lax.rsqrt(var + eps) * gamma + beta


if __name__ == "__main__":
    key = jax.random.PRNGKey(0)
    B, d_model, L = 2, 48, 16            # norm_dim == L == 16, n_heads == 6, head_dim == 8
    n_heads = 6
    ks = jax.random.split(key, 11)

    x = jax.random.normal(ks[0], (B, d_model, L), jnp.float32)

    wscale = 0.2
    w_q = jax.random.normal(ks[1], (d_model, d_model), jnp.float32) * wscale
    w_k = jax.random.normal(ks[2], (d_model, d_model), jnp.float32) * wscale
    w_v = jax.random.normal(ks[3], (d_model, d_model), jnp.float32) * wscale
    w_o = jax.random.normal(ks[4], (d_model, d_model), jnp.float32) * wscale
    b_q = jax.random.normal(ks[5], (d_model,), jnp.float32) * 0.05
    b_k = jax.random.normal(ks[6], (d_model,), jnp.float32) * 0.05
    b_v = jax.random.normal(ks[7], (d_model,), jnp.float32) * 0.05
    b_o = jax.random.normal(ks[8], (d_model,), jnp.float32) * 0.05
    gamma = 1.0 + 0.1 * jax.random.normal(ks[9], (L,), jnp.float32)
    beta = 0.05 * jax.random.normal(ks[10], (L,), jnp.float32)

    out = cate_atte_pallas(x, w_q, b_q, w_k, b_k, w_v, b_v, w_o, b_o, gamma, beta,
                           n_heads=n_heads)
    out = jax.block_until_ready(out)

    ref = cate_atte_ref(x, w_q, b_q, w_k, b_k, w_v, b_v, w_o, b_o, gamma, beta,
                        n_heads=n_heads)
    assert out.shape == (B, d_model, L)

    # Kernel matmuls run at DEFAULT (single-pass bf16, f32-accumulate) MXU precision while
    # the reference is fp32/HIGHEST; the softmax denominator uses the EUP approx reciprocal.
    # Error budget sized for that gap across 4 chained matmuls + softmax + residual + LN.
    max_abs = float(jnp.max(jnp.abs(out - ref)))
    rel_l2 = float(jnp.linalg.norm(out - ref) / jnp.linalg.norm(ref))
    assert rel_l2 < 2e-2 and max_abs < 1e-1, f"rel_l2={rel_l2:.3e} max_abs={max_abs:.3e}"

    print("KERNEL_OK")
</pallas_src>

<mosaic_0001>
module attributes {stable_mosaic.version = 11 : i64} {
  func.func @_cate_atte_kernel(%arg0: i32, %arg1: memref<2x16x48xf32, #tpu.memory_space<vmem>>, %arg2: memref<48x144xf32, #tpu.memory_space<vmem>>, %arg3: memref<1x144xf32, #tpu.memory_space<vmem>>, %arg4: memref<48x48xf32, #tpu.memory_space<vmem>>, %arg5: memref<1x48xf32, #tpu.memory_space<vmem>>, %arg6: memref<16x1xf32, #tpu.memory_space<vmem>>, %arg7: memref<16x1xf32, #tpu.memory_space<vmem>>, %arg8: memref<2x16x48xf32, #tpu.memory_space<vmem>>) attributes {dimension_semantics = [#tpu.dimension_semantics<parallel>], iteration_bounds = array<i64: 1>, scalar_prefetch = 0 : i64, scratch_operands = 0 : i64, tpu.core_type = #tpu.core_type<tc>, window_params = [{transform_indices = @transform_0, window_bounds = array<i64: 2, 16, 48>}, {pipeline_mode = #tpu.pipeline_mode<synchronous>, transform_indices = @transform_1, window_bounds = array<i64: 48, 144>}, {pipeline_mode = #tpu.pipeline_mode<synchronous>, transform_indices = @transform_2, window_bounds = array<i64: 1, 144>}, {pipeline_mode = #tpu.pipeline_mode<synchronous>, transform_indices = @transform_3, window_bounds = array<i64: 48, 48>}, {pipeline_mode = #tpu.pipeline_mode<synchronous>, transform_indices = @transform_4, window_bounds = array<i64: 1, 48>}, {pipeline_mode = #tpu.pipeline_mode<synchronous>, transform_indices = @transform_5, window_bounds = array<i64: 16, 1>}, {pipeline_mode = #tpu.pipeline_mode<synchronous>, transform_indices = @transform_6, window_bounds = array<i64: 16, 1>}, {transform_indices = @transform_7, window_bounds = array<i64: 2, 16, 48>}]} {
    %c0 = arith.constant 0 : index
    %c0_0 = arith.constant 0 : index
    %c0_1 = arith.constant 0 : index
    %0 = vector.load %arg1[%c0, %c0_0, %c0_1] : memref<2x16x48xf32, #tpu.memory_space<vmem>>, vector<1x16x48xf32>
    %1 = vector.shape_cast %0 : vector<1x16x48xf32> to vector<16x48xf32>
    %c1 = arith.constant 1 : index
    %c0_2 = arith.constant 0 : index
    %c0_3 = arith.constant 0 : index
    %2 = vector.load %arg1[%c1, %c0_2, %c0_3] : memref<2x16x48xf32, #tpu.memory_space<vmem>>, vector<1x16x48xf32>
    %3 = vector.shape_cast %2 : vector<1x16x48xf32> to vector<16x48xf32>
    %4 = tpu.concatenate %1, %3 in 0 : vector<16x48xf32>, vector<16x48xf32> -> vector<32x48xf32>
    %c0_4 = arith.constant 0 : index
    %c0_5 = arith.constant 0 : index
    %5 = vector.load %arg2[%c0_4, %c0_5] : memref<48x144xf32, #tpu.memory_space<vmem>>, vector<48x144xf32>
    %cst = arith.constant dense<0.000000e+00> : vector<32x144xf32>
    %6 = tpu.matmul %4, %5, %cst {dimension_numbers = #tpu.dot_dimension_numbers<[1], [0], [0], [1], [0, 0, 1, 1], [], []>} : vector<32x48xf32>, vector<48x144xf32>, vector<32x144xf32> -> vector<32x144xf32>
    %c0_6 = arith.constant 0 : index
    %c0_7 = arith.constant 0 : index
    %7 = vector.load %arg3[%c0_6, %c0_7] : memref<1x144xf32, #tpu.memory_space<vmem>>, vector<1x144xf32>
    %8 = vector.broadcast %7 : vector<1x144xf32> to vector<32x144xf32>
    %9 = arith.addf %6, %8 : vector<32x144xf32>
    %10 = vector.extract_strided_slice %9 {offsets = [0, 0], sizes = [16, 144], strides = [1, 1]} : vector<32x144xf32> to vector<16x144xf32>
    %11 = tpu.transpose %10, [1, 0] : vector<16x144xf32> -> vector<144x16xf32>
    %12 = vector.extract_strided_slice %11 {offsets = [0, 0], sizes = [8, 16], strides = [1, 1]} : vector<144x16xf32> to vector<8x16xf32>
    %13 = vector.extract_strided_slice %11 {offsets = [48, 0], sizes = [8, 16], strides = [1, 1]} : vector<144x16xf32> to vector<8x16xf32>
    %14 = vector.extract_strided_slice %11 {offsets = [96, 0], sizes = [8, 16], strides = [1, 1]} : vector<144x16xf32> to vector<8x16xf32>
    %cst_8 = arith.constant dense<0.000000e+00> : vector<16x16xf32>
    %15 = tpu.matmul %12, %13, %cst_8 {dimension_numbers = #tpu.dot_dimension_numbers<[0], [0], [1], [1], [0, 1, 1, 1], [], []>} : vector<8x16xf32>, vector<8x16xf32>, vector<16x16xf32> -> vector<16x16xf32>
    %cst_9 = arith.constant 0.353553385 : f32
    %16 = vector.broadcast %cst_9 : f32 to vector<16x16xf32>
    %17 = arith.mulf %15, %16 : vector<16x16xf32>
    %cst_10 = arith.constant dense<0xFF800000> : vector<16xf32>
    %18 = vector.multi_reduction <maximumf>, %17, %cst_10 [1] : vector<16x16xf32> to vector<16xf32>
    %19 = vector.shape_cast %18 : vector<16xf32> to vector<16x1xf32>
    %20 = vector.broadcast %19 : vector<16x1xf32> to vector<16x16xf32>
    %21 = arith.subf %17, %20 : vector<16x16xf32>
    %22 = math.exp %21 : vector<16x16xf32>
    %cst_11 = arith.constant dense<0.000000e+00> : vector<16xf32>
    %23 = vector.multi_reduction <add>, %22, %cst_11 [1] : vector<16x16xf32> to vector<16xf32>
    %24 = vector.shape_cast %23 : vector<16xf32> to vector<16x1xf32>
    %25 = tpu.reciprocal %24 {approx = true} : vector<16x1xf32> -> vector<16x1xf32>
    %26 = vector.broadcast %25 : vector<16x1xf32> to vector<16x16xf32>
    %27 = arith.mulf %22, %26 : vector<16x16xf32>
    %cst_12 = arith.constant dense<0.000000e+00> : vector<8x16xf32>
    %28 = tpu.matmul %14, %27, %cst_12 {dimension_numbers = #tpu.dot_dimension_numbers<[1], [1], [0], [0], [0, 0, 1, 0], [], []>} : vector<8x16xf32>, vector<16x16xf32>, vector<8x16xf32> -> vector<8x16xf32>
    %29 = vector.extract_strided_slice %11 {offsets = [8, 0], sizes = [8, 16], strides = [1, 1]} : vector<144x16xf32> to vector<8x16xf32>
    %30 = vector.extract_strided_slice %11 {offsets = [56, 0], sizes = [8, 16], strides = [1, 1]} : vector<144x16xf32> to vector<8x16xf32>
    %31 = vector.extract_strided_slice %11 {offsets = [104, 0], sizes = [8, 16], strides = [1, 1]} : vector<144x16xf32> to vector<8x16xf32>
    %cst_13 = arith.constant dense<0.000000e+00> : vector<16x16xf32>
    %32 = tpu.matmul %29, %30, %cst_13 {dimension_numbers = #tpu.dot_dimension_numbers<[0], [0], [1], [1], [0, 1, 1, 1], [], []>} : vector<8x16xf32>, vector<8x16xf32>, vector<16x16xf32> -> vector<16x16xf32>
    %cst_14 = arith.constant 0.353553385 : f32
    %33 = vector.broadcast %cst_14 : f32 to vector<16x16xf32>
    %34 = arith.mulf %32, %33 : vector<16x16xf32>
    %cst_15 = arith.constant dense<0xFF800000> : vector<16xf32>
    %35 = vector.multi_reduction <maximumf>, %34, %cst_15 [1] : vector<16x16xf32> to vector<16xf32>
    %36 = vector.shape_cast %35 : vector<16xf32> to vector<16x1xf32>
    %37 = vector.broadcast %36 : vector<16x1xf32> to vector<16x16xf32>
    %38 = arith.subf %34, %37 : vector<16x16xf32>
    %39 = math.exp %38 : vector<16x16xf32>
    %cst_16 = arith.constant dense<0.000000e+00> : vector<16xf32>
    %40 = vector.multi_reduction <add>, %39, %cst_16 [1] : vector<16x16xf32> to vector<16xf32>
    %41 = vector.shape_cast %40 : vector<16xf32> to vector<16x1xf32>
    %42 = tpu.reciprocal %41 {approx = true} : vector<16x1xf32> -> vector<16x1xf32>
    %43 = vector.broadcast %42 : vector<16x1xf32> to vector<16x16xf32>
    %44 = arith.mulf %39, %43 : vector<16x16xf32>
    %cst_17 = arith.constant dense<0.000000e+00> : vector<8x16xf32>
    %45 = tpu.matmul %31, %44, %cst_17 {dimension_numbers = #tpu.dot_dimension_numbers<[1], [1], [0], [0], [0, 0, 1, 0], [], []>} : vector<8x16xf32>, vector<16x16xf32>, vector<8x16xf32> -> vector<8x16xf32>
    %46 = vector.extract_strided_slice %11 {offsets = [16, 0], sizes = [8, 16], strides = [1, 1]} : vector<144x16xf32> to vector<8x16xf32>
    %47 = vector.extract_strided_slice %11 {offsets = [64, 0], sizes = [8, 16], strides = [1, 1]} : vector<144x16xf32> to vector<8x16xf32>
    %48 = vector.extract_strided_slice %11 {offsets = [112, 0], sizes = [8, 16], strides = [1, 1]} : vector<144x16xf32> to vector<8x16xf32>
    %cst_18 = arith.constant dense<0.000000e+00> : vector<16x16xf32>
    %49 = tpu.matmul %46, %47, %cst_18 {dimension_numbers = #tpu.dot_dimension_numbers<[0], [0], [1], [1], [0, 1, 1, 1], [], []>} : vector<8x16xf32>, vector<8x16xf32>, vector<16x16xf32> -> vector<16x16xf32>
    %cst_19 = arith.constant 0.353553385 : f32
    %50 = vector.broadcast %cst_19 : f32 to vector<16x16xf32>
    %51 = arith.mulf %49, %50 : vector<16x16xf32>
    %cst_20 = arith.constant dense<0xFF800000> : vector<16xf32>
    %52 = vector.multi_reduction <maximumf>, %51, %cst_20 [1] : vector<16x16xf32> to vector<16xf32>
    %53 = vector.shape_cast %52 : vector<16xf32> to vector<16x1xf32>
    %54 = vector.broadcast %53 : vector<16x1xf32> to vector<16x16xf32>
    %55 = arith.subf %51, %54 : vector<16x16xf32>
    %56 = math.exp %55 : vector<16x16xf32>
    %cst_21 = arith.constant dense<0.000000e+00> : vector<16xf32>
    %57 = vector.multi_reduction <add>, %56, %cst_21 [1] : vector<16x16xf32> to vector<16xf32>
    %58 = vector.shape_cast %57 : vector<16xf32> to vector<16x1xf32>
    %59 = tpu.reciprocal %58 {approx = true} : vector<16x1xf32> -> vector<16x1xf32>
    %60 = vector.broadcast %59 : vector<16x1xf32> to vector<16x16xf32>
    %61 = arith.mulf %56, %60 : vector<16x16xf32>
    %cst_22 = arith.constant dense<0.000000e+00> : vector<8x16xf32>
    %62 = tpu.matmul %48, %61, %cst_22 {dimension_numbers = #tpu.dot_dimension_numbers<[1], [1], [0], [0], [0, 0, 1, 0], [], []>} : vector<8x16xf32>, vector<16x16xf32>, vector<8x16xf32> -> vector<8x16xf32>
    %63 = vector.extract_strided_slice %11 {offsets = [24, 0], sizes = [8, 16], strides = [1, 1]} : vector<144x16xf32> to vector<8x16xf32>
    %64 = vector.extract_strided_slice %11 {offsets = [72, 0], sizes = [8, 16], strides = [1, 1]} : vector<144x16xf32> to vector<8x16xf32>
    %65 = vector.extract_strided_slice %11 {offsets = [120, 0], sizes = [8, 16], strides = [1, 1]} : vector<144x16xf32> to vector<8x16xf32>
    %cst_23 = arith.constant dense<0.000000e+00> : vector<16x16xf32>
    %66 = tpu.matmul %63, %64, %cst_23 {dimension_numbers = #tpu.dot_dimension_numbers<[0], [0], [1], [1], [0, 1, 1, 1], [], []>} : vector<8x16xf32>, vector<8x16xf32>, vector<16x16xf32> -> vector<16x16xf32>
    %cst_24 = arith.constant 0.353553385 : f32
    %67 = vector.broadcast %cst_24 : f32 to vector<16x16xf32>
    %68 = arith.mulf %66, %67 : vector<16x16xf32>
    %cst_25 = arith.constant dense<0xFF800000> : vector<16xf32>
    %69 = vector.multi_reduction <maximumf>, %68, %cst_25 [1] : vector<16x16xf32> to vector<16xf32>
    %70 = vector.shape_cast %69 : vector<16xf32> to vector<16x1xf32>
    %71 = vector.broadcast %70 : vector<16x1xf32> to vector<16x16xf32>
    %72 = arith.subf %68, %71 : vector<16x16xf32>
    %73 = math.exp %72 : vector<16x16xf32>
    %cst_26 = arith.constant dense<0.000000e+00> : vector<16xf32>
    %74 = vector.multi_reduction <add>, %73, %cst_26 [1] : vector<16x16xf32> to vector<16xf32>
    %75 = vector.shape_cast %74 : vector<16xf32> to vector<16x1xf32>
    %76 = tpu.reciprocal %75 {approx = true} : vector<16x1xf32> -> vector<16x1xf32>
    %77 = vector.broadcast %76 : vector<16x1xf32> to vector<16x16xf32>
    %78 = arith.mulf %73, %77 : vector<16x16xf32>
    %cst_27 = arith.constant dense<0.000000e+00> : vector<8x16xf32>
    %79 = tpu.matmul %65, %78, %cst_27 {dimension_numbers = #tpu.dot_dimension_numbers<[1], [1], [0], [0], [0, 0, 1, 0], [], []>} : vector<8x16xf32>, vector<16x16xf32>, vector<8x16xf32> -> vector<8x16xf32>
    %80 = vector.extract_strided_slice %11 {offsets = [32, 0], sizes = [8, 16], strides = [1, 1]} : vector<144x16xf32> to vector<8x16xf32>
    %81 = vector.extract_strided_slice %11 {offsets = [80, 0], sizes = [8, 16], strides = [1, 1]} : vector<144x16xf32> to vector<8x16xf32>
    %82 = vector.extract_strided_slice %11 {offsets = [128, 0], sizes = [8, 16], strides = [1, 1]} : vector<144x16xf32> to vector<8x16xf32>
    %cst_28 = arith.constant dense<0.000000e+00> : vector<16x16xf32>
    %83 = tpu.matmul %80, %81, %cst_28 {dimension_numbers = #tpu.dot_dimension_numbers<[0], [0], [1], [1], [0, 1, 1, 1], [], []>} : vector<8x16xf32>, vector<8x16xf32>, vector<16x16xf32> -> vector<16x16xf32>
    %cst_29 = arith.constant 0.353553385 : f32
    %84 = vector.broadcast %cst_29 : f32 to vector<16x16xf32>
    %85 = arith.mulf %83, %84 : vector<16x16xf32>
    %cst_30 = arith.constant dense<0xFF800000> : vector<16xf32>
    %86 = vector.multi_reduction <maximumf>, %85, %cst_30 [1] : vector<16x16xf32> to vector<16xf32>
    %87 = vector.shape_cast %86 : vector<16xf32> to vector<16x1xf32>
    %88 = vector.broadcast %87 : vector<16x1xf32> to vector<16x16xf32>
    %89 = arith.subf %85, %88 : vector<16x16xf32>
    %90 = math.exp %89 : vector<16x16xf32>
    %cst_31 = arith.constant dense<0.000000e+00> : vector<16xf32>
    %91 = vector.multi_reduction <add>, %90, %cst_31 [1] : vector<16x16xf32> to vector<16xf32>
    %92 = vector.shape_cast %91 : vector<16xf32> to vector<16x1xf32>
    %93 = tpu.reciprocal %92 {approx = true} : vector<16x1xf32> -> vector<16x1xf32>
    %94 = vector.broadcast %93 : vector<16x1xf32> to vector<16x16xf32>
    %95 = arith.mulf %90, %94 : vector<16x16xf32>
    %cst_32 = arith.constant dense<0.000000e+00> : vector<8x16xf32>
    %96 = tpu.matmul %82, %95, %cst_32 {dimension_numbers = #tpu.dot_dimension_numbers<[1], [1], [0], [0], [0, 0, 1, 0], [], []>} : vector<8x16xf32>, vector<16x16xf32>, vector<8x16xf32> -> vector<8x16xf32>
    %97 = vector.extract_strided_slice %11 {offsets = [40, 0], sizes = [8, 16], strides = [1, 1]} : vector<144x16xf32> to vector<8x16xf32>
    %98 = vector.extract_strided_slice %11 {offsets = [88, 0], sizes = [8, 16], strides = [1, 1]} : vector<144x16xf32> to vector<8x16xf32>
    %99 = vector.extract_strided_slice %11 {offsets = [136, 0], sizes = [8, 16], strides = [1, 1]} : vector<144x16xf32> to vector<8x16xf32>
    %cst_33 = arith.constant dense<0.000000e+00> : vector<16x16xf32>
    %100 = tpu.matmul %97, %98, %cst_33 {dimension_numbers = #tpu.dot_dimension_numbers<[0], [0], [1], [1], [0, 1, 1, 1], [], []>} : vector<8x16xf32>, vector<8x16xf32>, vector<16x16xf32> -> vector<16x16xf32>
    %cst_34 = arith.constant 0.353553385 : f32
    %101 = vector.broadcast %cst_34 : f32 to vector<16x16xf32>
    %102 = arith.mulf %100, %101 : vector<16x16xf32>
    %cst_35 = arith.constant dense<0xFF800000> : vector<16xf32>
    %103 = vector.multi_reduction <maximumf>, %102, %cst_35 [1] : vector<16x16xf32> to vector<16xf32>
    %104 = vector.shape_cast %103 : vector<16xf32> to vector<16x1xf32>
    %105 = vector.broadcast %104 : vector<16x1xf32> to vector<16x16xf32>
    %106 = arith.subf %102, %105 : vector<16x16xf32>
    %107 = math.exp %106 : vector<16x16xf32>
    %cst_36 = arith.constant dense<0.000000e+00> : vector<16xf32>
    %108 = vector.multi_reduction <add>, %107, %cst_36 [1] : vector<16x16xf32> to vector<16xf32>
    %109 = vector.shape_cast %108 : vector<16xf32> to vector<16x1xf32>
    %110 = tpu.reciprocal %109 {approx = true} : vector<16x1xf32> -> vector<16x1xf32>
    %111 = vector.broadcast %110 : vector<16x1xf32> to vector<16x16xf32>
    %112 = arith.mulf %107, %111 : vector<16x16xf32>
    %cst_37 = arith.constant dense<0.000000e+00> : vector<8x16xf32>
    %113 = tpu.matmul %99, %112, %cst_37 {dimension_numbers = #tpu.dot_dimension_numbers<[1], [1], [0], [0], [0, 0, 1, 0], [], []>} : vector<8x16xf32>, vector<16x16xf32>, vector<8x16xf32> -> vector<8x16xf32>
    %114 = tpu.concatenate %28, %45, %62, %79, %96, %113 in 0 : vector<8x16xf32>, vector<8x16xf32>, vector<8x16xf32>, vector<8x16xf32>, vector<8x16xf32>, vector<8x16xf32> -> vector<48x16xf32>
    %115 = tpu.transpose %114, [1, 0] : vector<48x16xf32> -> vector<16x48xf32>
    %116 = vector.extract_strided_slice %9 {offsets = [16, 0], sizes = [16, 144], strides = [1, 1]} : vector<32x144xf32> to vector<16x144xf32>
    %117 = tpu.transpose %116, [1, 0] : vector<16x144xf32> -> vector<144x16xf32>
    %118 = vector.extract_strided_slice %117 {offsets = [0, 0], sizes = [8, 16], strides = [1, 1]} : vector<144x16xf32> to vector<8x16xf32>
    %119 = vector.extract_strided_slice %117 {offsets = [48, 0], sizes = [8, 16], strides = [1, 1]} : vector<144x16xf32> to vector<8x16xf32>
    %120 = vector.extract_strided_slice %117 {offsets = [96, 0], sizes = [8, 16], strides = [1, 1]} : vector<144x16xf32> to vector<8x16xf32>
    %cst_38 = arith.constant dense<0.000000e+00> : vector<16x16xf32>
    %121 = tpu.matmul %118, %119, %cst_38 {dimension_numbers = #tpu.dot_dimension_numbers<[0], [0], [1], [1], [0, 1, 1, 1], [], []>} : vector<8x16xf32>, vector<8x16xf32>, vector<16x16xf32> -> vector<16x16xf32>
    %cst_39 = arith.constant 0.353553385 : f32
    %122 = vector.broadcast %cst_39 : f32 to vector<16x16xf32>
    %123 = arith.mulf %121, %122 : vector<16x16xf32>
    %cst_40 = arith.constant dense<0xFF800000> : vector<16xf32>
    %124 = vector.multi_reduction <maximumf>, %123, %cst_40 [1] : vector<16x16xf32> to vector<16xf32>
    %125 = vector.shape_cast %124 : vector<16xf32> to vector<16x1xf32>
    %126 = vector.broadcast %125 : vector<16x1xf32> to vector<16x16xf32>
    %127 = arith.subf %123, %126 : vector<16x16xf32>
    %128 = math.exp %127 : vector<16x16xf32>
    %cst_41 = arith.constant dense<0.000000e+00> : vector<16xf32>
    %129 = vector.multi_reduction <add>, %128, %cst_41 [1] : vector<16x16xf32> to vector<16xf32>
    %130 = vector.shape_cast %129 : vector<16xf32> to vector<16x1xf32>
    %131 = tpu.reciprocal %130 {approx = true} : vector<16x1xf32> -> vector<16x1xf32>
    %132 = vector.broadcast %131 : vector<16x1xf32> to vector<16x16xf32>
    %133 = arith.mulf %128, %132 : vector<16x16xf32>
    %cst_42 = arith.constant dense<0.000000e+00> : vector<8x16xf32>
    %134 = tpu.matmul %120, %133, %cst_42 {dimension_numbers = #tpu.dot_dimension_numbers<[1], [1], [0], [0], [0, 0, 1, 0], [], []>} : vector<8x16xf32>, vector<16x16xf32>, vector<8x16xf32> -> vector<8x16xf32>
    %135 = vector.extract_strided_slice %117 {offsets = [8, 0], sizes = [8, 16], strides = [1, 1]} : vector<144x16xf32> to vector<8x16xf32>
    %136 = vector.extract_strided_slice %117 {offsets = [56, 0], sizes = [8, 16], strides = [1, 1]} : vector<144x16xf32> to vector<8x16xf32>
    %137 = vector.extract_strided_slice %117 {offsets = [104, 0], sizes = [8, 16], strides = [1, 1]} : vector<144x16xf32> to vector<8x16xf32>
    %cst_43 = arith.constant dense<0.000000e+00> : vector<16x16xf32>
    %138 = tpu.matmul %135, %136, %cst_43 {dimension_numbers = #tpu.dot_dimension_numbers<[0], [0], [1], [1], [0, 1, 1, 1], [], []>} : vector<8x16xf32>, vector<8x16xf32>, vector<16x16xf32> -> vector<16x16xf32>
    %cst_44 = arith.constant 0.353553385 : f32
    %139 = vector.broadcast %cst_44 : f32 to vector<16x16xf32>
    %140 = arith.mulf %138, %139 : vector<16x16xf32>
    %cst_45 = arith.constant dense<0xFF800000> : vector<16xf32>
    %141 = vector.multi_reduction <maximumf>, %140, %cst_45 [1] : vector<16x16xf32> to vector<16xf32>
    %142 = vector.shape_cast %141 : vector<16xf32> to vector<16x1xf32>
    %143 = vector.broadcast %142 : vector<16x1xf32> to vector<16x16xf32>
    %144 = arith.subf %140, %143 : vector<16x16xf32>
    %145 = math.exp %144 : vector<16x16xf32>
    %cst_46 = arith.constant dense<0.000000e+00> : vector<16xf32>
    %146 = vector.multi_reduction <add>, %145, %cst_46 [1] : vector<16x16xf32> to vector<16xf32>
    %147 = vector.shape_cast %146 : vector<16xf32> to vector<16x1xf32>
    %148 = tpu.reciprocal %147 {approx = true} : vector<16x1xf32> -> vector<16x1xf32>
    %149 = vector.broadcast %148 : vector<16x1xf32> to vector<16x16xf32>
    %150 = arith.mulf %145, %149 : vector<16x16xf32>
    %cst_47 = arith.constant dense<0.000000e+00> : vector<8x16xf32>
    %151 = tpu.matmul %137, %150, %cst_47 {dimension_numbers = #tpu.dot_dimension_numbers<[1], [1], [0], [0], [0, 0, 1, 0], [], []>} : vector<8x16xf32>, vector<16x16xf32>, vector<8x16xf32> -> vector<8x16xf32>
    %152 = vector.extract_strided_slice %117 {offsets = [16, 0], sizes = [8, 16], strides = [1, 1]} : vector<144x16xf32> to vector<8x16xf32>
    %153 = vector.extract_strided_slice %117 {offsets = [64, 0], sizes = [8, 16], strides = [1, 1]} : vector<144x16xf32> to vector<8x16xf32>
    %154 = vector.extract_strided_slice %117 {offsets = [112, 0], sizes = [8, 16], strides = [1, 1]} : vector<144x16xf32> to vector<8x16xf32>
    %cst_48 = arith.constant dense<0.000000e+00> : vector<16x16xf32>
    %155 = tpu.matmul %152, %153, %cst_48 {dimension_numbers = #tpu.dot_dimension_numbers<[0], [0], [1], [1], [0, 1, 1, 1], [], []>} : vector<8x16xf32>, vector<8x16xf32>, vector<16x16xf32> -> vector<16x16xf32>
    %cst_49 = arith.constant 0.353553385 : f32
    %156 = vector.broadcast %cst_49 : f32 to vector<16x16xf32>
    %157 = arith.mulf %155, %156 : vector<16x16xf32>
    %cst_50 = arith.constant dense<0xFF800000> : vector<16xf32>
    %158 = vector.multi_reduction <maximumf>, %157, %cst_50 [1] : vector<16x16xf32> to vector<16xf32>
    %159 = vector.shape_cast %158 : vector<16xf32> to vector<16x1xf32>
    %160 = vector.broadcast %159 : vector<16x1xf32> to vector<16x16xf32>
    %161 = arith.subf %157, %160 : vector<16x16xf32>
    %162 = math.exp %161 : vector<16x16xf32>
    %cst_51 = arith.constant dense<0.000000e+00> : vector<16xf32>
    %163 = vector.multi_reduction <add>, %162, %cst_51 [1] : vector<16x16xf32> to vector<16xf32>
    %164 = vector.shape_cast %163 : vector<16xf32> to vector<16x1xf32>
    %165 = tpu.reciprocal %164 {approx = true} : vector<16x1xf32> -> vector<16x1xf32>
    %166 = vector.broadcast %165 : vector<16x1xf32> to vector<16x16xf32>
    %167 = arith.mulf %162, %166 : vector<16x16xf32>
    %cst_52 = arith.constant dense<0.000000e+00> : vector<8x16xf32>
    %168 = tpu.matmul %154, %167, %cst_52 {dimension_numbers = #tpu.dot_dimension_numbers<[1], [1], [0], [0], [0, 0, 1, 0], [], []>} : vector<8x16xf32>, vector<16x16xf32>, vector<8x16xf32> -> vector<8x16xf32>
    %169 = vector.extract_strided_slice %117 {offsets = [24, 0], sizes = [8, 16], strides = [1, 1]} : vector<144x16xf32> to vector<8x16xf32>
    %170 = vector.extract_strided_slice %117 {offsets = [72, 0], sizes = [8, 16], strides = [1, 1]} : vector<144x16xf32> to vector<8x16xf32>
    %171 = vector.extract_strided_slice %117 {offsets = [120, 0], sizes = [8, 16], strides = [1, 1]} : vector<144x16xf32> to vector<8x16xf32>
    %cst_53 = arith.constant dense<0.000000e+00> : vector<16x16xf32>
    %172 = tpu.matmul %169, %170, %cst_53 {dimension_numbers = #tpu.dot_dimension_numbers<[0], [0], [1], [1], [0, 1, 1, 1], [], []>} : vector<8x16xf32>, vector<8x16xf32>, vector<16x16xf32> -> vector<16x16xf32>
    %cst_54 = arith.constant 0.353553385 : f32
    %173 = vector.broadcast %cst_54 : f32 to vector<16x16xf32>
    %174 = arith.mulf %172, %173 : vector<16x16xf32>
    %cst_55 = arith.constant dense<0xFF800000> : vector<16xf32>
    %175 = vector.multi_reduction <maximumf>, %174, %cst_55 [1] : vector<16x16xf32> to vector<16xf32>
    %176 = vector.shape_cast %175 : vector<16xf32> to vector<16x1xf32>
    %177 = vector.broadcast %176 : vector<16x1xf32> to vector<16x16xf32>
    %178 = arith.subf %174, %177 : vector<16x16xf32>
    %179 = math.exp %178 : vector<16x16xf32>
    %cst_56 = arith.constant dense<0.000000e+00> : vector<16xf32>
    %180 = vector.multi_reduction <add>, %179, %cst_56 [1] : vector<16x16xf32> to vector<16xf32>
    %181 = vector.shape_cast %180 : vector<16xf32> to vector<16x1xf32>
    %182 = tpu.reciprocal %181 {approx = true} : vector<16x1xf32> -> vector<16x1xf32>
    %183 = vector.broadcast %182 : vector<16x1xf32> to vector<16x16xf32>
    %184 = arith.mulf %179, %183 : vector<16x16xf32>
    %cst_57 = arith.constant dense<0.000000e+00> : vector<8x16xf32>
    %185 = tpu.matmul %171, %184, %cst_57 {dimension_numbers = #tpu.dot_dimension_numbers<[1], [1], [0], [0], [0, 0, 1, 0], [], []>} : vector<8x16xf32>, vector<16x16xf32>, vector<8x16xf32> -> vector<8x16xf32>
    %186 = vector.extract_strided_slice %117 {offsets = [32, 0], sizes = [8, 16], strides = [1, 1]} : vector<144x16xf32> to vector<8x16xf32>
    %187 = vector.extract_strided_slice %117 {offsets = [80, 0], sizes = [8, 16], strides = [1, 1]} : vector<144x16xf32> to vector<8x16xf32>
    %188 = vector.extract_strided_slice %117 {offsets = [128, 0], sizes = [8, 16], strides = [1, 1]} : vector<144x16xf32> to vector<8x16xf32>
    %cst_58 = arith.constant dense<0.000000e+00> : vector<16x16xf32>
    %189 = tpu.matmul %186, %187, %cst_58 {dimension_numbers = #tpu.dot_dimension_numbers<[0], [0], [1], [1], [0, 1, 1, 1], [], []>} : vector<8x16xf32>, vector<8x16xf32>, vector<16x16xf32> -> vector<16x16xf32>
    %cst_59 = arith.constant 0.353553385 : f32
    %190 = vector.broadcast %cst_59 : f32 to vector<16x16xf32>
    %191 = arith.mulf %189, %190 : vector<16x16xf32>
    %cst_60 = arith.constant dense<0xFF800000> : vector<16xf32>
    %192 = vector.multi_reduction <maximumf>, %191, %cst_60 [1] : vector<16x16xf32> to vector<16xf32>
    %193 = vector.shape_cast %192 : vector<16xf32> to vector<16x1xf32>
    %194 = vector.broadcast %193 : vector<16x1xf32> to vector<16x16xf32>
    %195 = arith.subf %191, %194 : vector<16x16xf32>
    %196 = math.exp %195 : vector<16x16xf32>
    %cst_61 = arith.constant dense<0.000000e+00> : vector<16xf32>
    %197 = vector.multi_reduction <add>, %196, %cst_61 [1] : vector<16x16xf32> to vector<16xf32>
    %198 = vector.shape_cast %197 : vector<16xf32> to vector<16x1xf32>
    %199 = tpu.reciprocal %198 {approx = true} : vector<16x1xf32> -> vector<16x1xf32>
    %200 = vector.broadcast %199 : vector<16x1xf32> to vector<16x16xf32>
    %201 = arith.mulf %196, %200 : vector<16x16xf32>
    %cst_62 = arith.constant dense<0.000000e+00> : vector<8x16xf32>
    %202 = tpu.matmul %188, %201, %cst_62 {dimension_numbers = #tpu.dot_dimension_numbers<[1], [1], [0], [0], [0, 0, 1, 0], [], []>} : vector<8x16xf32>, vector<16x16xf32>, vector<8x16xf32> -> vector<8x16xf32>
    %203 = vector.extract_strided_slice %117 {offsets = [40, 0], sizes = [8, 16], strides = [1, 1]} : vector<144x16xf32> to vector<8x16xf32>
    %204 = vector.extract_strided_slice %117 {offsets = [88, 0], sizes = [8, 16], strides = [1, 1]} : vector<144x16xf32> to vector<8x16xf32>
    %205 = vector.extract_strided_slice %117 {offsets = [136, 0], sizes = [8, 16], strides = [1, 1]} : vector<144x16xf32> to vector<8x16xf32>
    %cst_63 = arith.constant dense<0.000000e+00> : vector<16x16xf32>
    %206 = tpu.matmul %203, %204, %cst_63 {dimension_numbers = #tpu.dot_dimension_numbers<[0], [0], [1], [1], [0, 1, 1, 1], [], []>} : vector<8x16xf32>, vector<8x16xf32>, vector<16x16xf32> -> vector<16x16xf32>
    %cst_64 = arith.constant 0.353553385 : f32
    %207 = vector.broadcast %cst_64 : f32 to vector<16x16xf32>
    %208 = arith.mulf %206, %207 : vector<16x16xf32>
    %cst_65 = arith.constant dense<0xFF800000> : vector<16xf32>
    %209 = vector.multi_reduction <maximumf>, %208, %cst_65 [1] : vector<16x16xf32> to vector<16xf32>
    %210 = vector.shape_cast %209 : vector<16xf32> to vector<16x1xf32>
    %211 = vector.broadcast %210 : vector<16x1xf32> to vector<16x16xf32>
    %212 = arith.subf %208, %211 : vector<16x16xf32>
    %213 = math.exp %212 : vector<16x16xf32>
    %cst_66 = arith.constant dense<0.000000e+00> : vector<16xf32>
    %214 = vector.multi_reduction <add>, %213, %cst_66 [1] : vector<16x16xf32> to vector<16xf32>
    %215 = vector.shape_cast %214 : vector<16xf32> to vector<16x1xf32>
    %216 = tpu.reciprocal %215 {approx = true} : vector<16x1xf32> -> vector<16x1xf32>
    %217 = vector.broadcast %216 : vector<16x1xf32> to vector<16x16xf32>
    %218 = arith.mulf %213, %217 : vector<16x16xf32>
    %cst_67 = arith.constant dense<0.000000e+00> : vector<8x16xf32>
    %219 = tpu.matmul %205, %218, %cst_67 {dimension_numbers = #tpu.dot_dimension_numbers<[1], [1], [0], [0], [0, 0, 1, 0], [], []>} : vector<8x16xf32>, vector<16x16xf32>, vector<8x16xf32> -> vector<8x16xf32>
    %220 = tpu.concatenate %134, %151, %168, %185, %202, %219 in 0 : vector<8x16xf32>, vector<8x16xf32>, vector<8x16xf32>, vector<8x16xf32>, vector<8x16xf32>, vector<8x16xf32> -> vector<48x16xf32>
    %221 = tpu.transpose %220, [1, 0] : vector<48x16xf32> -> vector<16x48xf32>
    %222 = tpu.concatenate %115, %221 in 0 : vector<16x48xf32>, vector<16x48xf32> -> vector<32x48xf32>
    %c0_68 = arith.constant 0 : index
    %c0_69 = arith.constant 0 : index
    %223 = vector.load %arg4[%c0_68, %c0_69] : memref<48x48xf32, #tpu.memory_space<vmem>>, vector<48x48xf32>
    %cst_70 = arith.constant dense<0.000000e+00> : vector<32x48xf32>
    %224 = tpu.matmul %222, %223, %cst_70 {dimension_numbers = #tpu.dot_dimension_numbers<[1], [0], [0], [1], [0, 0, 1, 1], [], []>} : vector<32x48xf32>, vector<48x48xf32>, vector<32x48xf32> -> vector<32x48xf32>
    %c0_71 = arith.constant 0 : index
    %c0_72 = arith.constant 0 : index
    %225 = vector.load %arg5[%c0_71, %c0_72] : memref<1x48xf32, #tpu.memory_space<vmem>>, vector<1x48xf32>
    %226 = vector.broadcast %225 : vector<1x48xf32> to vector<32x48xf32>
    %227 = arith.addf %224, %226 : vector<32x48xf32>
    %228 = arith.mulf %4, %227 : vector<32x48xf32>
    %c0_73 = arith.constant 0 : index
    %c0_74 = arith.constant 0 : index
    %229 = vector.load %arg6[%c0_73, %c0_74] : memref<16x1xf32, #tpu.memory_space<vmem>>, vector<16x1xf32>
    %c0_75 = arith.constant 0 : index
    %c0_76 = arith.constant 0 : index
    %230 = vector.load %arg7[%c0_75, %c0_76] : memref<16x1xf32, #tpu.memory_space<vmem>>, vector<16x1xf32>
    %231 = vector.extract_strided_slice %228 {offsets = [0, 0], sizes = [16, 48], strides = [1, 1]} : vector<32x48xf32> to vector<16x48xf32>
    %cst_77 = arith.constant dense<0.000000e+00> : vector<48xf32>
    %232 = vector.multi_reduction <add>, %231, %cst_77 [0] : vector<16x48xf32> to vector<48xf32>
    %233 = vector.shape_cast %232 : vector<48xf32> to vector<1x48xf32>
    %cst_78 = arith.constant 1.600000e+01 : f32
    %234 = vector.broadcast %cst_78 : f32 to vector<1x48xf32>
    %235 = arith.divf %233, %234 : vector<1x48xf32>
    %236 = vector.broadcast %235 : vector<1x48xf32> to vector<16x48xf32>
    %237 = arith.subf %231, %236 : vector<16x48xf32>
    %238 = arith.mulf %237, %237 : vector<16x48xf32>
    %cst_79 = arith.constant dense<0.000000e+00> : vector<48xf32>
    %239 = vector.multi_reduction <add>, %238, %cst_79 [0] : vector<16x48xf32> to vector<48xf32>
    %240 = vector.shape_cast %239 : vector<48xf32> to vector<1x48xf32>
    %cst_80 = arith.constant 1.600000e+01 : f32
    %241 = vector.broadcast %cst_80 : f32 to vector<1x48xf32>
    %242 = arith.divf %240, %241 : vector<1x48xf32>
    %cst_81 = arith.constant 9.99999974E-6 : f32
    %243 = vector.broadcast %cst_81 : f32 to vector<1x48xf32>
    %244 = arith.addf %242, %243 : vector<1x48xf32>
    %245 = math.rsqrt %244 : vector<1x48xf32>
    %246 = vector.broadcast %245 : vector<1x48xf32> to vector<16x48xf32>
    %247 = arith.mulf %237, %246 : vector<16x48xf32>
    %248 = vector.broadcast %229 : vector<16x1xf32> to vector<16x48xf32>
    %249 = arith.mulf %247, %248 : vector<16x48xf32>
    %250 = vector.broadcast %230 : vector<16x1xf32> to vector<16x48xf32>
    %251 = arith.addf %249, %250 : vector<16x48xf32>
    %c0_82 = arith.constant 0 : index
    %c0_83 = arith.constant 0 : index
    %c0_84 = arith.constant 0 : index
    %252 = vector.load %arg8[%c0_82, %c0_83, %c0_84] : memref<2x16x48xf32, #tpu.memory_space<vmem>>, vector<1x16x48xf32>
    %253 = vector.shape_cast %252 : vector<1x16x48xf32> to vector<16x48xf32>
    %254 = vector.shape_cast %251 : vector<16x48xf32> to vector<1x16x48xf32>
    tpu.vector_store %arg8[%c0_82, %c0_83, %c0_84], %254 {strides = array<i32>} : memref<2x16x48xf32, #tpu.memory_space<vmem>>, vector<1x16x48xf32>,
    %255 = vector.extract_strided_slice %228 {offsets = [16, 0], sizes = [16, 48], strides = [1, 1]} : vector<32x48xf32> to vector<16x48xf32>
    %cst_85 = arith.constant dense<0.000000e+00> : vector<48xf32>
    %256 = vector.multi_reduction <add>, %255, %cst_85 [0] : vector<16x48xf32> to vector<48xf32>
    %257 = vector.shape_cast %256 : vector<48xf32> to vector<1x48xf32>
    %cst_86 = arith.constant 1.600000e+01 : f32
    %258 = vector.broadcast %cst_86 : f32 to vector<1x48xf32>
    %259 = arith.divf %257, %258 : vector<1x48xf32>
    %260 = vector.broadcast %259 : vector<1x48xf32> to vector<16x48xf32>
    %261 = arith.subf %255, %260 : vector<16x48xf32>
    %262 = arith.mulf %261, %261 : vector<16x48xf32>
    %cst_87 = arith.constant dense<0.000000e+00> : vector<48xf32>
    %263 = vector.multi_reduction <add>, %262, %cst_87 [0] : vector<16x48xf32> to vector<48xf32>
    %264 = vector.shape_cast %263 : vector<48xf32> to vector<1x48xf32>
    %cst_88 = arith.constant 1.600000e+01 : f32
    %265 = vector.broadcast %cst_88 : f32 to vector<1x48xf32>
    %266 = arith.divf %264, %265 : vector<1x48xf32>
    %cst_89 = arith.constant 9.99999974E-6 : f32
    %267 = vector.broadcast %cst_89 : f32 to vector<1x48xf32>
    %268 = arith.addf %266, %267 : vector<1x48xf32>
    %269 = math.rsqrt %268 : vector<1x48xf32>
    %270 = vector.broadcast %269 : vector<1x48xf32> to vector<16x48xf32>
    %271 = arith.mulf %261, %270 : vector<16x48xf32>
    %272 = vector.broadcast %229 : vector<16x1xf32> to vector<16x48xf32>
    %273 = arith.mulf %271, %272 : vector<16x48xf32>
    %274 = vector.broadcast %230 : vector<16x1xf32> to vector<16x48xf32>
    %275 = arith.addf %273, %274 : vector<16x48xf32>
    %c1_90 = arith.constant 1 : index
    %c0_91 = arith.constant 0 : index
    %c0_92 = arith.constant 0 : index
    %276 = vector.load %arg8[%c1_90, %c0_91, %c0_92] : memref<2x16x48xf32, #tpu.memory_space<vmem>>, vector<1x16x48xf32>
    %277 = vector.shape_cast %276 : vector<1x16x48xf32> to vector<16x48xf32>
    %278 = vector.shape_cast %275 : vector<16x48xf32> to vector<1x16x48xf32>
    tpu.vector_store %arg8[%c1_90, %c0_91, %c0_92], %278 {strides = array<i32>} : memref<2x16x48xf32, #tpu.memory_space<vmem>>, vector<1x16x48xf32>,
    return
  }
  func.func @transform_0(%arg0: i32) -> (i32, i32, i32) {
    %c0_i32 = arith.constant 0 : i32
    %c0_i32_0 = arith.constant 0 : i32
    %c0_i32_1 = arith.constant 0 : i32
    return %arg0, %c0_i32, %c0_i32_0 : i32, i32, i32
  }
  func.func @transform_1(%arg0: i32) -> (i32, i32) {
    %c0_i32 = arith.constant 0 : i32
    %c0_i32_0 = arith.constant 0 : i32
    %c0_i32_1 = arith.constant 0 : i32
    return %c0_i32, %c0_i32_0 : i32, i32
  }
  func.func @transform_2(%arg0: i32) -> (i32, i32) {
    %c0_i32 = arith.constant 0 : i32
    %c0_i32_0 = arith.constant 0 : i32
    %c0_i32_1 = arith.constant 0 : i32
    return %c0_i32, %c0_i32_0 : i32, i32
  }
  func.func @transform_3(%arg0: i32) -> (i32, i32) {
    %c0_i32 = arith.constant 0 : i32
    %c0_i32_0 = arith.constant 0 : i32
    %c0_i32_1 = arith.constant 0 : i32
    return %c0_i32, %c0_i32_0 : i32, i32
  }
  func.func @transform_4(%arg0: i32) -> (i32, i32) {
    %c0_i32 = arith.constant 0 : i32
    %c0_i32_0 = arith.constant 0 : i32
    %c0_i32_1 = arith.constant 0 : i32
    return %c0_i32, %c0_i32_0 : i32, i32
  }
  func.func @transform_5(%arg0: i32) -> (i32, i32) {
    %c0_i32 = arith.constant 0 : i32
    %c0_i32_0 = arith.constant 0 : i32
    %c0_i32_1 = arith.constant 0 : i32
    return %c0_i32, %c0_i32_0 : i32, i32
  }
  func.func @transform_6(%arg0: i32) -> (i32, i32) {
    %c0_i32 = arith.constant 0 : i32
    %c0_i32_0 = arith.constant 0 : i32
    %c0_i32_1 = arith.constant 0 : i32
    return %c0_i32, %c0_i32_0 : i32, i32
  }
  func.func @transform_7(%arg0: i32) -> (i32, i32, i32) {
    %c0_i32 = arith.constant 0 : i32
    %c0_i32_0 = arith.constant 0 : i32
    %c0_i32_1 = arith.constant 0 : i32
    return %arg0, %c0_i32, %c0_i32_0 : i32, i32, i32
  }
}

</mosaic_0001>

<llo_original>
// kernel: tpu_custom_call.1
$region0: #{tpu_custom_call.1}
  #allocation0 [shape = 'u32[]', space=smem, size = 0x4, offset = 0x4, fixed_abs, tag = 'smem constant byte address 0x4 - core index']
  #allocation1 [shape = 'u32[72,128]{1,0:T(1,128)}', space=vmem, size = 0x9000, scoped, tag = 'internal scratch']
  %s0 = inlined_call_operand.vmem [shape: f32[2,16,48], index: 0, kind: input, shape index: {}]
  %s1 = inlined_call_operand.hbm [shape: f32[48,144], index: 1, kind: input, shape index: {}]
  %s2 = inlined_call_operand.hbm [shape: f32[1,144], index: 2, kind: input, shape index: {}]
  %s3 = inlined_call_operand.hbm [shape: f32[48,48], index: 3, kind: input, shape index: {}]
  %s4 = inlined_call_operand.vmem [shape: f32[1,48], index: 4, kind: input, shape index: {}]
  %s5 = inlined_call_operand.vmem [shape: f32[16,1], index: 5, kind: input, shape index: {}]
  %s6 = inlined_call_operand.vmem [shape: f32[16,1], index: 6, kind: input, shape index: {}]
  %s7 = inlined_call_operand.hbm [shape: f32[2,16,48], index: 7, kind: output, shape index: {}]
  %s8 = sld [smem:[#allocation0]]
  $region50: #{tpu_custom_call.1} parent=0
    _
  %s10 = ssub.s32 1, %s8
  %s11 = scalar_select 0, %s10, %s8
  $region1: #{tpu_custom_call.1} parent=0
    #allocation2 [shape = 'u8[49152]{0}', space=vmem, size = 0xc000, scoped, tag = 'input window, operand 1, single buffered']
    #allocation3 [shape = 's32[1]{0}', space=sflag, size = 0x4, scoped, tag = 'scoped memory for tpu_custom_call.1']
    #allocation4 [shape = 's32[1]{0}', space=sflag, size = 0x4, scoped, tag = 'scoped memory for tpu_custom_call.1']
    #allocation5 [shape = 'u8[1024]{0}', space=vmem, size = 0x400, scoped, tag = 'input window, operand 2, single buffered']
    #allocation6 [shape = 's32[1]{0}', space=sflag, size = 0x4, scoped, tag = 'scoped memory for tpu_custom_call.1']
    #allocation7 [shape = 'u8[24576]{0}', space=vmem, size = 0x6000, scoped, tag = 'input window, operand 3, single buffered']
    #allocation8 [shape = 'u8[16384]{0}', space=vmem, size = 0x4000, scoped, tag = 'output window, operand 0, single buffered']
    %12 = vsyncpa [#allocation3], 0
    %13 = vsyncpa [#allocation6], 0
    %14 = vsyncpa [#allocation4], 0
    // Predicated region
    $region2: #{tpu_custom_call.1} parent=1 // pred_check
      _
    $region3: #{tpu_custom_call.1} parent=1 // pred_check_branch
      %16 = sbr.rel (0) target = $region5
    $region4: #{tpu_custom_call.1} parent=1 // pred_region
      _
    $region5: #{tpu_custom_call.1} parent=1 // pred_fallthru
      _
    // Predicated region
    $region6: #{tpu_custom_call.1} parent=1 // pred_check
      _
    $region7: #{tpu_custom_call.1} parent=1 // pred_check_branch
      %18 = sbr.rel (0) target = $region9
    $region8: #{tpu_custom_call.1} parent=1 // pred_region
      %20 = vsyncadd [#allocation3], 0
      %s21 = sshll.u32 %s1, 4
      %s22 = int_to_ptr.hbm [resolvable:$true] %s21
      %s23 = sshll.u32 [#allocation2], 4
      %s24 = int_to_ptr.vmem [resolvable:$true] %s23
      %29 = dma.hbm_to_vmem [thread:$0]  %s22, 1536, %s24, [#allocation3], 256, 256, 16
    $region9: #{tpu_custom_call.1} parent=1 // pred_fallthru
      _
    // Predicated region
    $region10: #{tpu_custom_call.1} parent=1 // pred_check
      _
    $region11: #{tpu_custom_call.1} parent=1 // pred_check_branch
      %31 = sbr.rel (0) target = $region13
    $region12: #{tpu_custom_call.1} parent=1 // pred_region
      %33 = vsyncadd [#allocation6], 0
      %s35 = sshll.u32 %s2, 4
      %s36 = int_to_ptr.hbm [resolvable:$true] %s35
      %s37 = sshll.u32 [#allocation5], 4
      %s38 = int_to_ptr.vmem [resolvable:$true] %s37
      %40 = dma.hbm_to_vmem [thread:$0]  %s36, 32, %s38, [#allocation6]
    $region13: #{tpu_custom_call.1} parent=1 // pred_fallthru
      _
    // Predicated region
    $region14: #{tpu_custom_call.1} parent=1 // pred_check
      _
    $region15: #{tpu_custom_call.1} parent=1 // pred_check_branch
      %42 = sbr.rel (0) target = $region17
    $region16: #{tpu_custom_call.1} parent=1 // pred_region
      %44 = vsyncadd [#allocation6], 0
      %s45 = sshll.u32 %s3, 4
      %s46 = int_to_ptr.hbm [resolvable:$true] %s45
      %s47 = sshll.u32 [#allocation7], 4
      %s48 = int_to_ptr.vmem [resolvable:$true] %s47
      %53 = dma.hbm_to_vmem [thread:$0]  %s46, 768, %s48, [#allocation6], 128, 128, 8
    $region17: #{tpu_custom_call.1} parent=1 // pred_fallthru
      _
    // Predicated region
    $region18: #{tpu_custom_call.1} parent=1 // pred_check
      _
    $region19: #{tpu_custom_call.1} parent=1 // pred_check_branch
      %55 = sbr.rel (0) target = $region21
    $region20: #{tpu_custom_call.1} parent=1 // pred_region
      _
    $region21: #{tpu_custom_call.1} parent=1 // pred_fallthru
      _
    // Predicated region
    $region22: #{tpu_custom_call.1} parent=1 // pred_check
      _
    $region23: #{tpu_custom_call.1} parent=1 // pred_check_branch
      %57 = sbr.rel (0) target = $region25
    $region24: #{tpu_custom_call.1} parent=1 // pred_region
      _
    $region25: #{tpu_custom_call.1} parent=1 // pred_fallthru
      _
    // Predicated region
    $region26: #{tpu_custom_call.1} parent=1 // pred_check
      _
    $region27: #{tpu_custom_call.1} parent=1 // pred_check_branch
      %59 = sbr.rel (0) target = $region29
    $region28: #{tpu_custom_call.1} parent=1 // pred_region
      _
    $region29: #{tpu_custom_call.1} parent=1 // pred_fallthru
      _
    // Predicated region
    $region30: #{tpu_custom_call.1} parent=1 // pred_check
      _
    $region31: #{tpu_custom_call.1} parent=1 // pred_check_branch
      %61 = sbr.rel (0) target = $region33
    $region32: #{tpu_custom_call.1} parent=1 // pred_region
      %63 = dma.done [#allocation3], 1536
    $region33: #{tpu_custom_call.1} parent=1 // pred_fallthru
      _
    // Predicated region
    $region34: #{tpu_custom_call.1} parent=1 // pred_check
      _
    $region35: #{tpu_custom_call.1} parent=1 // pred_check_branch
      %65 = sbr.rel (0) target = $region37
    $region36: #{tpu_custom_call.1} parent=1 // pred_region
      %67 = dma.done [#allocation6], 32
    $region37: #{tpu_custom_call.1} parent=1 // pred_fallthru
      _
    // Predicated region
    $region38: #{tpu_custom_call.1} parent=1 // pred_check
      _
    $region39: #{tpu_custom_call.1} parent=1 // pred_check_branch
      %69 = sbr.rel (0) target = $region41
    $region40: #{tpu_custom_call.1} parent=1 // pred_region
      %71 = dma.done [#allocation6], 768
    $region41: #{tpu_custom_call.1} parent=1 // pred_fallthru
      _
    %v72 = vld [vmem:[%s0] sm:$0xff]
    %v73 = vld [vmem:[%s0 + $0x8] sm:$0xff]
    %s74 = scalar_lea.vmem %s0, 16
    %v75 = vld [vmem:[%s74] sm:$0xff]
    %v76 = vld [vmem:[%s74 + $0x8] sm:$0xff]
    %v77 = vld [vmem:[#allocation2] sm:$0xff]
    %v78 = vld [vmem:[#allocation2 + $0x8] sm:$0xff]
    %v79 = vld [vmem:[#allocation2 + $0x10] sm:$0xff]
    %v80 = vld [vmem:[#allocation2 + $0x18] sm:$0xff]
    %v81 = vld [vmem:[#allocation2 + $0x20] sm:$0xff]
    %v82 = vld [vmem:[#allocation2 + $0x28] sm:$0xff]
    %v83 = vld [vmem:[#allocation2 + $0x30] sm:$0xff]
    %v84 = vld [vmem:[#allocation2 + $0x38] sm:$0xff]
    %v85 = vld [vmem:[#allocation2 + $0x40] sm:$0xff]
    %v86 = vld [vmem:[#allocation2 + $0x48] sm:$0xff]
    %v87 = vld [vmem:[#allocation2 + $0x50] sm:$0xff]
    %v88 = vld [vmem:[#allocation2 + $0x58] sm:$0xff]
    %v89 = vld [vmem:[#allocation5] sm:$0x3]
    %v91 = vperm.slane %v89, 0
    %v92 = vperm.slane %v89, 1
    %vm95 = vcmask 392192
    %v97 = vsel %vm95, %v72, 0
    %v100 = vsel %vm95, %v73, 0
    %v103 = vsel %vm95, %v75, 0
    %v106 = vsel %vm95, %v76, 0
    %108 = vmatpush.msra.mxu0 0.0
    %109 = vmatpush.msra.mxu0 0.0
    %110 = vmatpush.msra.mxu0 0.0
    %111 = vmatpush.msra.mxu0 0.0
    %112 = vmatpush.msra.mxu0 0.0
    %113 = vmatpush.msra.mxu0 0.0
    %114 = vmatpush.msra.mxu0 0.0
    %115 = vmatpush.msra.mxu0 0.0
    %116 = vmatpush.msra.mxu0 0.0
    %117 = vmatpush.msra.mxu0 0.0
    %118 = vmatpush.msra.mxu0 %v87
    %119 = vmatpush.msra.mxu0 %v85
    %120 = vmatpush.msra.mxu0 %v83
    %121 = vmatpush.msra.mxu0 %v81
    %122 = vmatpush.msra.mxu0 %v79
    %123 = vmatpush.msra.mxu0 %v77
    %124 = vmatmul.f32.gmra.mxu0 %v97
    %v125 = vpop.f32.mrf.mxu0
    %v126 = vadd.f32 %v91, %v125
    %127 = vmatmul.f32.gmra.mxu0 %v100
    %v128 = vpop.f32.mrf.mxu0
    %v129 = vadd.f32 %v91, %v128
    %130 = vmatmul.f32.gmra.mxu0 %v103
    %v131 = vpop.f32.mrf.mxu0
    %v132 = vadd.f32 %v91, %v131
    %133 = vmatmul.f32.gmra.mxu0 %v106
    %v134 = vpop.f32.mrf.mxu0
    %v135 = vadd.f32 %v91, %v134
    %136 = vdwg.mxu0
    %137 = vmatpush.msra.mxu0 0.0
    %138 = vmatpush.msra.mxu0 0.0
    %139 = vmatpush.msra.mxu0 0.0
    %140 = vmatpush.msra.mxu0 0.0
    %141 = vmatpush.msra.mxu0 0.0
    %142 = vmatpush.msra.mxu0 0.0
    %143 = vmatpush.msra.mxu0 0.0
    %144 = vmatpush.msra.mxu0 0.0
    %145 = vmatpush.msra.mxu0 0.0
    %146 = vmatpush.msra.mxu0 0.0
    %147 = vmatpush.msra.mxu0 %v88
    %148 = vmatpush.msra.mxu0 %v86
    %149 = vmatpush.msra.mxu0 %v84
    %150 = vmatpush.msra.mxu0 %v82
    %151 = vmatpush.msra.mxu0 %v80
    %152 = vmatpush.msra.mxu0 %v78
    %153 = vmatmul.f32.gmra.mxu0 %v97
    %v154 = vpop.f32.mrf.mxu0
    %v155 = vadd.f32 %v92, %v154
    %156 = vmatmul.f32.gmra.mxu0 %v100
    %v157 = vpop.f32.mrf.mxu0
    %v158 = vadd.f32 %v92, %v157
    %159 = vmatmul.f32.gmra.mxu0 %v103
    %v160 = vpop.f32.mrf.mxu0
    %v161 = vadd.f32 %v92, %v160
    %162 = vmatmul.f32.gmra.mxu0 %v106
    %v163 = vpop.f32.mrf.mxu0
    %v164 = vadd.f32 %v92, %v163
    %165 = vdwg.mxu0
    %166 = vxpose.xlu0.b32.start [1/16] %v126, 128
    %167 = vxpose.xlu0.b32.cont [2/16] %v129, 128
    %168 = vxpose.xlu0.b32.cont [3/16] 0.0, 128
    %169 = vxpose.xlu0.b32.cont [4/16] 0.0, 128
    %170 = vxpose.xlu0.b32.cont [5/16] 0.0, 128
    %171 = vxpose.xlu0.b32.cont [6/16] 0.0, 128
    %172 = vxpose.xlu0.b32.cont [7/16] 0.0, 128
    %173 = vxpose.xlu0.b32.cont [8/16] 0.0, 128
    %174 = vxpose.xlu0.b32.cont [9/16] 0.0, 128
    %175 = vxpose.xlu0.b32.cont [10/16] 0.0, 128
    %176 = vxpose.xlu0.b32.cont [11/16] 0.0, 128
    %177 = vxpose.xlu0.b32.cont [12/16] 0.0, 128
    %178 = vxpose.xlu0.b32.cont [13/16] 0.0, 128
    %179 = vxpose.xlu0.b32.cont [14/16] 0.0, 128
    %180 = vxpose.xlu0.b32.cont [15/16] 0.0, 128
    %181 = vxpose.xlu0.b32.end [16/16] 0.0, 128
    %v182 = vpop.trf.xlu0
    %v183 = vpop.trf.xlu0
    %v184 = vpop.trf.xlu0
    %v185 = vpop.trf.xlu0
    %v186 = vpop.trf.xlu0
    %v187 = vpop.trf.xlu0
    %v188 = vpop.trf.xlu0
    %v189 = vpop.trf.xlu0
    %v190 = vpop.trf.xlu0
    %v191 = vpop.trf.xlu0
    %v192 = vpop.trf.xlu0
    %v193 = vpop.trf.xlu0
    %v194 = vpop.trf.xlu0
    %v195 = vpop.trf.xlu0
    %v196 = vpop.trf.xlu0
    %v197 = vpop.trf.xlu0
    %198 = vxpose.xlu0.b32.start [1/16] %v155, 128
    %199 = vxpose.xlu0.b32.cont [2/16] %v158, 128
    %200 = vxpose.xlu0.b32.cont [3/16] 0.0, 128
    %201 = vxpose.xlu0.b32.cont [4/16] 0.0, 128
    %202 = vxpose.xlu0.b32.cont [5/16] 0.0, 128
    %203 = vxpose.xlu0.b32.cont [6/16] 0.0, 128
    %204 = vxpose.xlu0.b32.cont [7/16] 0.0, 128
    %205 = vxpose.xlu0.b32.cont [8/16] 0.0, 128
    %206 = vxpose.xlu0.b32.cont [9/16] 0.0, 128
    %207 = vxpose.xlu0.b32.cont [10/16] 0.0, 128
    %208 = vxpose.xlu0.b32.cont [11/16] 0.0, 128
    %209 = vxpose.xlu0.b32.cont [12/16] 0.0, 128
    %210 = vxpose.xlu0.b32.cont [13/16] 0.0, 128
    %211 = vxpose.xlu0.b32.cont [14/16] 0.0, 128
    %212 = vxpose.xlu0.b32.cont [15/16] 0.0, 128
    %213 = vxpose.xlu0.b32.end [16/16] 0.0, 128
    %v214 = vpop.trf.xlu0
    %v215 = vpop.trf.xlu0
    %v216 = vpop.trf.xlu0
    %v217 = vpop.trf.xlu0
    %v218 = vpop.trf.xlu0
    %v219 = vpop.trf.xlu0
    %v220 = vpop.trf.xlu0
    %v221 = vpop.trf.xlu0
    %v222 = vpop.trf.xlu0
    %v223 = vpop.trf.xlu0
    %v224 = vpop.trf.xlu0
    %v225 = vpop.trf.xlu0
    %v226 = vpop.trf.xlu0
    %v227 = vpop.trf.xlu0
    %v228 = vpop.trf.xlu0
    %v229 = vpop.trf.xlu0
    %230 = vxpose.xlu0.b32.start [1/16] %v182, 128
    %231 = vxpose.xlu0.b32.cont [2/16] 0.0, 128
    %232 = vxpose.xlu0.b32.cont [3/16] 0.0, 128
    %233 = vxpose.xlu0.b32.cont [4/16] 0.0, 128
    %234 = vxpose.xlu0.b32.cont [5/16] 0.0, 128
    %235 = vxpose.xlu0.b32.cont [6/16] 0.0, 128
    %236 = vxpose.xlu0.b32.cont [7/16] 0.0, 128
    %237 = vxpose.xlu0.b32.cont [8/16] 0.0, 128
    %238 = vxpose.xlu0.b32.cont [9/16] 0.0, 128
    %239 = vxpose.xlu0.b32.cont [10/16] 0.0, 128
    %240 = vxpose.xlu0.b32.cont [11/16] 0.0, 128
    %241 = vxpose.xlu0.b32.cont [12/16] 0.0, 128
    %242 = vxpose.xlu0.b32.cont [13/16] 0.0, 128
    %243 = vxpose.xlu0.b32.cont [14/16] 0.0, 128
    %244 = vxpose.xlu0.b32.cont [15/16] 0.0, 128
    %245 = vxpose.xlu0.b32.end [16/16] 0.0, 128
    %v246 = vpop.trf.xlu0
    %v247 = vpop.trf.xlu0
    %v248 = vpop.trf.xlu0
    %v249 = vpop.trf.xlu0
    %v250 = vpop.trf.xlu0
    %v251 = vpop.trf.xlu0
    %v252 = vpop.trf.xlu0
    %v253 = vpop.trf.xlu0
    %v254 = vpop.trf.xlu0
    %v255 = vpop.trf.xlu0
    %v256 = vpop.trf.xlu0
    %v257 = vpop.trf.xlu0
    %v258 = vpop.trf.xlu0
    %v259 = vpop.trf.xlu0
    %v260 = vpop.trf.xlu0
    %v261 = vpop.trf.xlu0
    %vm262 = vcmask 64512
    %v264 = vsel %vm262, %v246, 0
    %v267 = vsel %vm262, %v247, 0
    %269 = vmatpush.msra.mxu0 0.0
    %270 = vmatpush.msra.mxu0 0.0
    %271 = vmatpush.msra.mxu0 0.0
    %272 = vmatpush.msra.mxu0 0.0
    %273 = vmatpush.msra.mxu0 0.0
    %274 = vmatpush.msra.mxu0 0.0
    %275 = vmatpush.msra.mxu0 0.0
    %276 = vmatpush.msra.mxu0 0.0
    %277 = vmatpush.msra.mxu0 0.0
    %278 = vmatpush.msra.mxu0 0.0
    %279 = vmatpush.msra.mxu0 0.0
    %280 = vmatpush.msra.mxu0 0.0
    %281 = vmatpush.msra.mxu0 0.0
    %282 = vmatpush.msra.mxu0 0.0
    %283 = vmatpush.msra.mxu0 0.0
    %284 = vmatpush.msra.mxu0 %v188
    %285 = vmatmul.f32.gmra.mxu0 %v264
    %v286 = vpop.f32.mrf.mxu0
    %v287 = vadd.f32 0.0, %v286
    %288 = vmatmul.f32.gmra.mxu0 %v267
    %v289 = vpop.f32.mrf.mxu0
    %v290 = vadd.f32 0.0, %v289
    %291 = vdwg.mxu0
    %v292 = vmul.f32 %v287, 0.35355338
    %v293 = vmul.f32 %v290, 0.35355338
    %vm294 = vcmask 130048
    %v295 = vsel %vm294, %v292, -inf
    %296 = vmax.xlane.f32.xlu0 %v295
    %v297 = vpop.xlane.xlu0 %296
    %v298 = vsel %vm294, %v293, -inf
    %299 = vmax.xlane.f32.xlu0 %v298
    %v300 = vpop.xlane.xlu0 %299
    %v301 = vsub.f32 %v292, %v297
    %v302 = vsub.f32 %v293, %v300
    %v303 = vmul.f32 %v301, 1.442695
    %v304 = vpow.pop %v303
    %v305 = vmul.f32 %v302, 1.442695
    %v306 = vpow.pop %v305
    %v307 = vsel %vm294, %v304, 0.0
    %308 = vadd.xlane.f32.xlu0 %v307
    %v309 = vpop.xlane.xlu0 %308
    %v310 = vsel %vm294, %v306, 0.0
    %311 = vadd.xlane.f32.xlu0 %v310
    %v312 = vpop.xlane.xlu0 %311
    %v313 = vrcp.pop %v309
    %v314 = vrcp.pop %v312
    %v315 = vmul.f32 %v304, %v313
    %v316 = vmul.f32 %v306, %v314
    %v318 = vsel %vm294, %v194, 0
    %v321 = vsel %vm294, %v315, 0
    %v324 = vsel %vm294, %v316, 0
    %326 = vmatpush.xpose.msra.mxu0 0.0
    %327 = vmatpush.xpose.msra.mxu0 0.0
    %328 = vmatpush.xpose.msra.mxu0 0.0
    %329 = vmatpush.xpose.msra.mxu0 0.0
    %330 = vmatpush.xpose.msra.mxu0 0.0
    %331 = vmatpush.xpose.msra.mxu0 0.0
    %332 = vmatpush.xpose.msra.mxu0 0.0
    %333 = vmatpush.xpose.msra.mxu0 0.0
    %334 = vmatpush.xpose.msra.mxu0 0.0
    %335 = vmatpush.xpose.msra.mxu0 0.0
    %336 = vmatpush.xpose.msra.mxu0 0.0
    %337 = vmatpush.xpose.msra.mxu0 0.0
    %338 = vmatpush.xpose.msra.mxu0 0.0
    %339 = vmatpush.xpose.msra.mxu0 0.0
    %340 = vmatpush.xpose.msra.mxu0 %v324
    %341 = vmatpush.xpose.msra.mxu0 %v321
    %342 = vmatmul.f32.gmra.mxu0 %v318
    %v343 = vpop.f32.mrf.mxu0
    %v344 = vadd.f32 0.0, %v343
    %345 = vdwg.mxu0
    %346 = vxpose.xlu0.b32.start [1/16] %v183, 128
    %347 = vxpose.xlu0.b32.cont [2/16] 0.0, 128
    %348 = vxpose.xlu0.b32.cont [3/16] 0.0, 128
    %349 = vxpose.xlu0.b32.cont [4/16] 0.0, 128
    %350 = vxpose.xlu0.b32.cont [5/16] 0.0, 128
    %351 = vxpose.xlu0.b32.cont [6/16] 0.0, 128
    %352 = vxpose.xlu0.b32.cont [7/16] 0.0, 128
    %353 = vxpose.xlu0.b32.cont [8/16] 0.0, 128
    %354 = vxpose.xlu0.b32.cont [9/16] 0.0, 128
    %355 = vxpose.xlu0.b32.cont [10/16] 0.0, 128
    %356 = vxpose.xlu0.b32.cont [11/16] 0.0, 128
    %357 = vxpose.xlu0.b32.cont [12/16] 0.0, 128
    %358 = vxpose.xlu0.b32.cont [13/16] 0.0, 128
    %359 = vxpose.xlu0.b32.cont [14/16] 0.0, 128
    %360 = vxpose.xlu0.b32.cont [15/16] 0.0, 128
    %361 = vxpose.xlu0.b32.end [16/16] 0.0, 128
    %v362 = vpop.trf.xlu0
    %v363 = vpop.trf.xlu0
    %v364 = vpop.trf.xlu0
    %v365 = vpop.trf.xlu0
    %v366 = vpop.trf.xlu0
    %v367 = vpop.trf.xlu0
    %v368 = vpop.trf.xlu0
    %v369 = vpop.trf.xlu0
    %v370 = vpop.trf.xlu0
    %v371 = vpop.trf.xlu0
    %v372 = vpop.trf.xlu0
    %v373 = vpop.trf.xlu0
    %v374 = vpop.trf.xlu0
    %v375 = vpop.trf.xlu0
    %v376 = vpop.trf.xlu0
    %v377 = vpop.trf.xlu0
    %v379 = vsel %vm262, %v362, 0
    %v382 = vsel %vm262, %v363, 0
    %384 = vmatpush.msra.mxu0 0.0
    %385 = vmatpush.msra.mxu0 0.0
    %386 = vmatpush.msra.mxu0 0.0
    %387 = vmatpush.msra.mxu0 0.0
    %388 = vmatpush.msra.mxu0 0.0
    %389 = vmatpush.msra.mxu0 0.0
    %390 = vmatpush.msra.mxu0 0.0
    %391 = vmatpush.msra.mxu0 0.0
    %392 = vmatpush.msra.mxu0 0.0
    %393 = vmatpush.msra.mxu0 0.0
    %394 = vmatpush.msra.mxu0 0.0
    %395 = vmatpush.msra.mxu0 0.0
    %396 = vmatpush.msra.mxu0 0.0
    %397 = vmatpush.msra.mxu0 0.0
    %398 = vmatpush.msra.mxu0 0.0
    %399 = vmatpush.msra.mxu0 %v189
    %400 = vmatmul.f32.gmra.mxu0 %v379
    %v401 = vpop.f32.mrf.mxu0
    %v402 = vadd.f32 0.0, %v401
    %403 = vmatmul.f32.gmra.mxu0 %v382
    %v404 = vpop.f32.mrf.mxu0
    %v405 = vadd.f32 0.0, %v404
    %406 = vdwg.mxu0
    %v407 = vmul.f32 %v402, 0.35355338
    %v408 = vmul.f32 %v405, 0.35355338
    %v409 = vsel %vm294, %v407, -inf
    %410 = vmax.xlane.f32.xlu0 %v409
    %v411 = vpop.xlane.xlu0 %410
    %v412 = vsel %vm294, %v408, -inf
    %413 = vmax.xlane.f32.xlu0 %v412
    %v414 = vpop.xlane.xlu0 %413
    %v415 = vsub.f32 %v407, %v411
    %v416 = vsub.f32 %v408, %v414
    %v417 = vmul.f32 %v415, 1.442695
    %v418 = vpow.pop %v417
    %v419 = vmul.f32 %v416, 1.442695
    %v420 = vpow.pop %v419
    %v421 = vsel %vm294, %v418, 0.0
    %422 = vadd.xlane.f32.xlu0 %v421
    %v423 = vpop.xlane.xlu0 %422
    %v424 = vsel %vm294, %v420, 0.0
    %425 = vadd.xlane.f32.xlu0 %v424
    %v426 = vpop.xlane.xlu0 %425
    %v427 = vrcp.pop %v423
    %v428 = vrcp.pop %v426
    %v429 = vmul.f32 %v418, %v427
    %v430 = vmul.f32 %v420, %v428
    %v432 = vsel %vm294, %v195, 0
    %v435 = vsel %vm294, %v429, 0
    %v438 = vsel %vm294, %v430, 0
    %440 = vmatpush.xpose.msra.mxu0 0.0
    %441 = vmatpush.xpose.msra.mxu0 0.0
    %442 = vmatpush.xpose.msra.mxu0 0.0
    %443 = vmatpush.xpose.msra.mxu0 0.0
    %444 = vmatpush.xpose.msra.mxu0 0.0
    %445 = vmatpush.xpose.msra.mxu0 0.0
    %446 = vmatpush.xpose.msra.mxu0 0.0
    %447 = vmatpush.xpose.msra.mxu0 0.0
    %448 = vmatpush.xpose.msra.mxu0 0.0
    %449 = vmatpush.xpose.msra.mxu0 0.0
    %450 = vmatpush.xpose.msra.mxu0 0.0
    %451 = vmatpush.xpose.msra.mxu0 0.0
    %452 = vmatpush.xpose.msra.mxu0 0.0
    %453 = vmatpush.xpose.msra.mxu0 0.0
    %454 = vmatpush.xpose.msra.mxu0 %v438
    %455 = vmatpush.xpose.msra.mxu0 %v435
    %456 = vmatmul.f32.gmra.mxu0 %v432
    %v457 = vpop.f32.mrf.mxu0
    %v458 = vadd.f32 0.0, %v457
    %459 = vdwg.mxu0
    %460 = vxpose.xlu0.b32.start [1/16] %v184, 128
    %461 = vxpose.xlu0.b32.cont [2/16] 0.0, 128
    %462 = vxpose.xlu0.b32.cont [3/16] 0.0, 128
    %463 = vxpose.xlu0.b32.cont [4/16] 0.0, 128
    %464 = vxpose.xlu0.b32.cont [5/16] 0.0, 128
    %465 = vxpose.xlu0.b32.cont [6/16] 0.0, 128
    %466 = vxpose.xlu0.b32.cont [7/16] 0.0, 128
    %467 = vxpose.xlu0.b32.cont [8/16] 0.0, 128
    %468 = vxpose.xlu0.b32.cont [9/16] 0.0, 128
    %469 = vxpose.xlu0.b32.cont [10/16] 0.0, 128
    %470 = vxpose.xlu0.b32.cont [11/16] 0.0, 128
    %471 = vxpose.xlu0.b32.cont [12/16] 0.0, 128
    %472 = vxpose.xlu0.b32.cont [13/16] 0.0, 128
    %473 = vxpose.xlu0.b32.cont [14/16] 0.0, 128
    %474 = vxpose.xlu0.b32.cont [15/16] 0.0, 128
    %475 = vxpose.xlu0.b32.end [16/16] 0.0, 128
    %v476 = vpop.trf.xlu0
    %v477 = vpop.trf.xlu0
    %v478 = vpop.trf.xlu0
    %v479 = vpop.trf.xlu0
    %v480 = vpop.trf.xlu0
    %v481 = vpop.trf.xlu0
    %v482 = vpop.trf.xlu0
    %v483 = vpop.trf.xlu0
    %v484 = vpop.trf.xlu0
    %v485 = vpop.trf.xlu0
    %v486 = vpop.trf.xlu0
    %v487 = vpop.trf.xlu0
    %v488 = vpop.trf.xlu0
    %v489 = vpop.trf.xlu0
    %v490 = vpop.trf.xlu0
    %v491 = vpop.trf.xlu0
    %v493 = vsel %vm262, %v476, 0
    %v496 = vsel %vm262, %v477, 0
    %498 = vmatpush.msra.mxu0 0.0
    %499 = vmatpush.msra.mxu0 0.0
    %500 = vmatpush.msra.mxu0 0.0
    %501 = vmatpush.msra.mxu0 0.0
    %502 = vmatpush.msra.mxu0 0.0
    %503 = vmatpush.msra.mxu0 0.0
    %504 = vmatpush.msra.mxu0 0.0
    %505 = vmatpush.msra.mxu0 0.0
    %506 = vmatpush.msra.mxu0 0.0
    %507 = vmatpush.msra.mxu0 0.0
    %508 = vmatpush.msra.mxu0 0.0
    %509 = vmatpush.msra.mxu0 0.0
    %510 = vmatpush.msra.mxu0 0.0
    %511 = vmatpush.msra.mxu0 0.0
    %512 = vmatpush.msra.mxu0 0.0
    %513 = vmatpush.msra.mxu0 %v190
    %514 = vmatmul.f32.gmra.mxu0 %v493
    %v515 = vpop.f32.mrf.mxu0
    %v516 = vadd.f32 0.0, %v515
    %517 = vmatmul.f32.gmra.mxu0 %v496
    %v518 = vpop.f32.mrf.mxu0
    %v519 = vadd.f32 0.0, %v518
    %520 = vdwg.mxu0
    %v521 = vmul.f32 %v516, 0.35355338
    %v522 = vmul.f32 %v519, 0.35355338
    %v523 = vsel %vm294, %v521, -inf
    %524 = vmax.xlane.f32.xlu0 %v523
    %v525 = vpop.xlane.xlu0 %524
    %v526 = vsel %vm294, %v522, -inf
    %527 = vmax.xlane.f32.xlu0 %v526
    %v528 = vpop.xlane.xlu0 %527
    %v529 = vsub.f32 %v521, %v525
    %v530 = vsub.f32 %v522, %v528
    %v531 = vmul.f32 %v529, 1.442695
    %v532 = vpow.pop %v531
    %v533 = vmul.f32 %v530, 1.442695
    %v534 = vpow.pop %v533
    %v535 = vsel %vm294, %v532, 0.0
    %536 = vadd.xlane.f32.xlu0 %v535
    %v537 = vpop.xlane.xlu0 %536
    %v538 = vsel %vm294, %v534, 0.0
    %539 = vadd.xlane.f32.xlu0 %v538
    %v540 = vpop.xlane.xlu0 %539
    %v541 = vrcp.pop %v537
    %v542 = vrcp.pop %v540
    %v543 = vmul.f32 %v532, %v541
    %v544 = vmul.f32 %v534, %v542
    %v546 = vsel %vm294, %v196, 0
    %v549 = vsel %vm294, %v543, 0
    %v552 = vsel %vm294, %v544, 0
    %554 = vmatpush.xpose.msra.mxu0 0.0
    %555 = vmatpush.xpose.msra.mxu0 0.0
    %556 = vmatpush.xpose.msra.mxu0 0.0
    %557 = vmatpush.xpose.msra.mxu0 0.0
    %558 = vmatpush.xpose.msra.mxu0 0.0
    %559 = vmatpush.xpose.msra.mxu0 0.0
    %560 = vmatpush.xpose.msra.mxu0 0.0
    %561 = vmatpush.xpose.msra.mxu0 0.0
    %562 = vmatpush.xpose.msra.mxu0 0.0
    %563 = vmatpush.xpose.msra.mxu0 0.0
    %564 = vmatpush.xpose.msra.mxu0 0.0
    %565 = vmatpush.xpose.msra.mxu0 0.0
    %566 = vmatpush.xpose.msra.mxu0 0.0
    %567 = vmatpush.xpose.msra.mxu0 0.0
    %568 = vmatpush.xpose.msra.mxu0 %v552
    %569 = vmatpush.xpose.msra.mxu0 %v549
    %570 = vmatmul.f32.gmra.mxu0 %v546
    %v571 = vpop.f32.mrf.mxu0
    %v572 = vadd.f32 0.0, %v571
    %573 = vdwg.mxu0
    %574 = vxpose.xlu0.b32.start [1/16] %v185, 128
    %575 = vxpose.xlu0.b32.cont [2/16] 0.0, 128
    %576 = vxpose.xlu0.b32.cont [3/16] 0.0, 128
    %577 = vxpose.xlu0.b32.cont [4/16] 0.0, 128
    %578 = vxpose.xlu0.b32.cont [5/16] 0.0, 128
    %579 = vxpose.xlu0.b32.cont [6/16] 0.0, 128
    %580 = vxpose.xlu0.b32.cont [7/16] 0.0, 128
    %581 = vxpose.xlu0.b32.cont [8/16] 0.0, 128
    %582 = vxpose.xlu0.b32.cont [9/16] 0.0, 128
    %583 = vxpose.xlu0.b32.cont [10/16] 0.0, 128
    %584 = vxpose.xlu0.b32.cont [11/16] 0.0, 128
    %585 = vxpose.xlu0.b32.cont [12/16] 0.0, 128
    %586 = vxpose.xlu0.b32.cont [13/16] 0.0, 128
    %587 = vxpose.xlu0.b32.cont [14/16] 0.0, 128
    %588 = vxpose.xlu0.b32.cont [15/16] 0.0, 128
    %589 = vxpose.xlu0.b32.end [16/16] 0.0, 128
    %v590 = vpop.trf.xlu0
    %v591 = vpop.trf.xlu0
    %v592 = vpop.trf.xlu0
    %v593 = vpop.trf.xlu0
    %v594 = vpop.trf.xlu0
    %v595 = vpop.trf.xlu0
    %v596 = vpop.trf.xlu0
    %v597 = vpop.trf.xlu0
    %v598 = vpop.trf.xlu0
    %v599 = vpop.trf.xlu0
    %v600 = vpop.trf.xlu0
    %v601 = vpop.trf.xlu0
    %v602 = vpop.trf.xlu0
    %v603 = vpop.trf.xlu0
    %v604 = vpop.trf.xlu0
    %v605 = vpop.trf.xlu0
    %v607 = vsel %vm262, %v590, 0
    %v610 = vsel %vm262, %v591, 0
    %612 = vmatpush.msra.mxu0 0.0
    %613 = vmatpush.msra.mxu0 0.0
    %614 = vmatpush.msra.mxu0 0.0
    %615 = vmatpush.msra.mxu0 0.0
    %616 = vmatpush.msra.mxu0 0.0
    %617 = vmatpush.msra.mxu0 0.0
    %618 = vmatpush.msra.mxu0 0.0
    %619 = vmatpush.msra.mxu0 0.0
    %620 = vmatpush.msra.mxu0 0.0
    %621 = vmatpush.msra.mxu0 0.0
    %622 = vmatpush.msra.mxu0 0.0
    %623 = vmatpush.msra.mxu0 0.0
    %624 = vmatpush.msra.mxu0 0.0
    %625 = vmatpush.msra.mxu0 0.0
    %626 = vmatpush.msra.mxu0 0.0
    %627 = vmatpush.msra.mxu0 %v191
    %628 = vmatmul.f32.gmra.mxu0 %v607
    %v629 = vpop.f32.mrf.mxu0
    %v630 = vadd.f32 0.0, %v629
    %631 = vmatmul.f32.gmra.mxu0 %v610
    %v632 = vpop.f32.mrf.mxu0
    %v633 = vadd.f32 0.0, %v632
    %634 = vdwg.mxu0
    %v635 = vmul.f32 %v630, 0.35355338
    %v636 = vmul.f32 %v633, 0.35355338
    %v637 = vsel %vm294, %v635, -inf
    %638 = vmax.xlane.f32.xlu0 %v637
    %v639 = vpop.xlane.xlu0 %638
    %v640 = vsel %vm294, %v636, -inf
    %641 = vmax.xlane.f32.xlu0 %v640
    %v642 = vpop.xlane.xlu0 %641
    %v643 = vsub.f32 %v635, %v639
    %v644 = vsub.f32 %v636, %v642
    %v645 = vmul.f32 %v643, 1.442695
    %v646 = vpow.pop %v645
    %v647 = vmul.f32 %v644, 1.442695
    %v648 = vpow.pop %v647
    %v649 = vsel %vm294, %v646, 0.0
    %650 = vadd.xlane.f32.xlu0 %v649
    %v651 = vpop.xlane.xlu0 %650
    %v652 = vsel %vm294, %v648, 0.0
    %653 = vadd.xlane.f32.xlu0 %v652
    %v654 = vpop.xlane.xlu0 %653
    %v655 = vrcp.pop %v651
    %v656 = vrcp.pop %v654
    %v657 = vmul.f32 %v646, %v655
    %v658 = vmul.f32 %v648, %v656
    %v660 = vsel %vm294, %v197, 0
    %v663 = vsel %vm294, %v657, 0
    %v666 = vsel %vm294, %v658, 0
    %668 = vmatpush.xpose.msra.mxu0 0.0
    %669 = vmatpush.xpose.msra.mxu0 0.0
    %670 = vmatpush.xpose.msra.mxu0 0.0
    %671 = vmatpush.xpose.msra.mxu0 0.0
    %672 = vmatpush.xpose.msra.mxu0 0.0
    %673 = vmatpush.xpose.msra.mxu0 0.0
    %674 = vmatpush.xpose.msra.mxu0 0.0
    %675 = vmatpush.xpose.msra.mxu0 0.0
    %676 = vmatpush.xpose.msra.mxu0 0.0
    %677 = vmatpush.xpose.msra.mxu0 0.0
    %678 = vmatpush.xpose.msra.mxu0 0.0
    %679 = vmatpush.xpose.msra.mxu0 0.0
    %680 = vmatpush.xpose.msra.mxu0 0.0
    %681 = vmatpush.xpose.msra.mxu0 0.0
    %682 = vmatpush.xpose.msra.mxu0 %v666
    %683 = vmatpush.xpose.msra.mxu0 %v663
    %684 = vmatmul.f32.gmra.mxu0 %v660
    %v685 = vpop.f32.mrf.mxu0
    %v686 = vadd.f32 0.0, %v685
    %687 = vdwg.mxu0
    %688 = vxpose.xlu0.b32.start [1/16] %v186, 128
    %689 = vxpose.xlu0.b32.cont [2/16] 0.0, 128
    %690 = vxpose.xlu0.b32.cont [3/16] 0.0, 128
    %691 = vxpose.xlu0.b32.cont [4/16] 0.0, 128
    %692 = vxpose.xlu0.b32.cont [5/16] 0.0, 128
    %693 = vxpose.xlu0.b32.cont [6/16] 0.0, 128
    %694 = vxpose.xlu0.b32.cont [7/16] 0.0, 128
    %695 = vxpose.xlu0.b32.cont [8/16] 0.0, 128
    %696 = vxpose.xlu0.b32.cont [9/16] 0.0, 128
    %697 = vxpose.xlu0.b32.cont [10/16] 0.0, 128
    %698 = vxpose.xlu0.b32.cont [11/16] 0.0, 128
    %699 = vxpose.xlu0.b32.cont [12/16] 0.0, 128
    %700 = vxpose.xlu0.b32.cont [13/16] 0.0, 128
    %701 = vxpose.xlu0.b32.cont [14/16] 0.0, 128
    %702 = vxpose.xlu0.b32.cont [15/16] 0.0, 128
    %703 = vxpose.xlu0.b32.end [16/16] 0.0, 128
    %v704 = vpop.trf.xlu0
    %v705 = vpop.trf.xlu0
    %v706 = vpop.trf.xlu0
    %v707 = vpop.trf.xlu0
    %v708 = vpop.trf.xlu0
    %v709 = vpop.trf.xlu0
    %v710 = vpop.trf.xlu0
    %v711 = vpop.trf.xlu0
    %v712 = vpop.trf.xlu0
    %v713 = vpop.trf.xlu0
    %v714 = vpop.trf.xlu0
    %v715 = vpop.trf.xlu0
    %v716 = vpop.trf.xlu0
    %v717 = vpop.trf.xlu0
    %v718 = vpop.trf.xlu0
    %v719 = vpop.trf.xlu0
    %v721 = vsel %vm262, %v704, 0
    %v724 = vsel %vm262, %v705, 0
    %726 = vmatpush.msra.mxu0 0.0
    %727 = vmatpush.msra.mxu0 0.0
    %728 = vmatpush.msra.mxu0 0.0
    %729 = vmatpush.msra.mxu0 0.0
    %730 = vmatpush.msra.mxu0 0.0
    %731 = vmatpush.msra.mxu0 0.0
    %732 = vmatpush.msra.mxu0 0.0
    %733 = vmatpush.msra.mxu0 0.0
    %734 = vmatpush.msra.mxu0 0.0
    %735 = vmatpush.msra.mxu0 0.0
    %736 = vmatpush.msra.mxu0 0.0
    %737 = vmatpush.msra.mxu0 0.0
    %738 = vmatpush.msra.mxu0 0.0
    %739 = vmatpush.msra.mxu0 0.0
    %740 = vmatpush.msra.mxu0 0.0
    %741 = vmatpush.msra.mxu0 %v192
    %742 = vmatmul.f32.gmra.mxu0 %v721
    %v743 = vpop.f32.mrf.mxu0
    %v744 = vadd.f32 0.0, %v743
    %745 = vmatmul.f32.gmra.mxu0 %v724
    %v746 = vpop.f32.mrf.mxu0
    %v747 = vadd.f32 0.0, %v746
    %748 = vdwg.mxu0
    %v749 = vmul.f32 %v744, 0.35355338
    %v750 = vmul.f32 %v747, 0.35355338
    %v751 = vsel %vm294, %v749, -inf
    %752 = vmax.xlane.f32.xlu0 %v751
    %v753 = vpop.xlane.xlu0 %752
    %v754 = vsel %vm294, %v750, -inf
    %755 = vmax.xlane.f32.xlu0 %v754
    %v756 = vpop.xlane.xlu0 %755
    %v757 = vsub.f32 %v749, %v753
    %v758 = vsub.f32 %v750, %v756
    %v759 = vmul.f32 %v757, 1.442695
    %v760 = vpow.pop %v759
    %v761 = vmul.f32 %v758, 1.442695
    %v762 = vpow.pop %v761
    %v763 = vsel %vm294, %v760, 0.0
    %764 = vadd.xlane.f32.xlu0 %v763
    %v765 = vpop.xlane.xlu0 %764
    %v766 = vsel %vm294, %v762, 0.0
    %767 = vadd.xlane.f32.xlu0 %v766
    %v768 = vpop.xlane.xlu0 %767
    %v769 = vrcp.pop %v765
    %v770 = vrcp.pop %v768
    %v771 = vmul.f32 %v760, %v769
    %v772 = vmul.f32 %v762, %v770
    %v774 = vsel %vm294, %v214, 0
    %v777 = vsel %vm294, %v771, 0
    %v780 = vsel %vm294, %v772, 0
    %782 = vmatpush.xpose.msra.mxu0 0.0
    %783 = vmatpush.xpose.msra.mxu0 0.0
    %784 = vmatpush.xpose.msra.mxu0 0.0
    %785 = vmatpush.xpose.msra.mxu0 0.0
    %786 = vmatpush.xpose.msra.mxu0 0.0
    %787 = vmatpush.xpose.msra.mxu0 0.0
    %788 = vmatpush.xpose.msra.mxu0 0.0
    %789 = vmatpush.xpose.msra.mxu0 0.0
    %790 = vmatpush.xpose.msra.mxu0 0.0
    %791 = vmatpush.xpose.msra.mxu0 0.0
    %792 = vmatpush.xpose.msra.mxu0 0.0
    %793 = vmatpush.xpose.msra.mxu0 0.0
    %794 = vmatpush.xpose.msra.mxu0 0.0
    %795 = vmatpush.xpose.msra.mxu0 0.0
    %796 = vmatpush.xpose.msra.mxu0 %v780
    %797 = vmatpush.xpose.msra.mxu0 %v777
    %798 = vmatmul.f32.gmra.mxu0 %v774
    %v799 = vpop.f32.mrf.mxu0
    %v800 = vadd.f32 0.0, %v799
    %801 = vdwg.mxu0
    %802 = vxpose.xlu0.b32.start [1/16] %v187, 128
    %803 = vxpose.xlu0.b32.cont [2/16] 0.0, 128
    %804 = vxpose.xlu0.b32.cont [3/16] 0.0, 128
    %805 = vxpose.xlu0.b32.cont [4/16] 0.0, 128
    %806 = vxpose.xlu0.b32.cont [5/16] 0.0, 128
    %807 = vxpose.xlu0.b32.cont [6/16] 0.0, 128
    %808 = vxpose.xlu0.b32.cont [7/16] 0.0, 128
    %809 = vxpose.xlu0.b32.cont [8/16] 0.0, 128
    %810 = vxpose.xlu0.b32.cont [9/16] 0.0, 128
    %811 = vxpose.xlu0.b32.cont [10/16] 0.0, 128
    %812 = vxpose.xlu0.b32.cont [11/16] 0.0, 128
    %813 = vxpose.xlu0.b32.cont [12/16] 0.0, 128
    %814 = vxpose.xlu0.b32.cont [13/16] 0.0, 128
    %815 = vxpose.xlu0.b32.cont [14/16] 0.0, 128
    %816 = vxpose.xlu0.b32.cont [15/16] 0.0, 128
    %817 = vxpose.xlu0.b32.end [16/16] 0.0, 128
    %v818 = vpop.trf.xlu0
    %v819 = vpop.trf.xlu0
    %v820 = vpop.trf.xlu0
    %v821 = vpop.trf.xlu0
    %v822 = vpop.trf.xlu0
    %v823 = vpop.trf.xlu0
    %v824 = vpop.trf.xlu0
    %v825 = vpop.trf.xlu0
    %v826 = vpop.trf.xlu0
    %v827 = vpop.trf.xlu0
    %v828 = vpop.trf.xlu0
    %v829 = vpop.trf.xlu0
    %v830 = vpop.trf.xlu0
    %v831 = vpop.trf.xlu0
    %v832 = vpop.trf.xlu0
    %v833 = vpop.trf.xlu0
    %v835 = vsel %vm262, %v818, 0
    %v838 = vsel %vm262, %v819, 0
    %840 = vmatpush.msra.mxu0 0.0
    %841 = vmatpush.msra.mxu0 0.0
    %842 = vmatpush.msra.mxu0 0.0
    %843 = vmatpush.msra.mxu0 0.0
    %844 = vmatpush.msra.mxu0 0.0
    %845 = vmatpush.msra.mxu0 0.0
    %846 = vmatpush.msra.mxu0 0.0
    %847 = vmatpush.msra.mxu0 0.0
    %848 = vmatpush.msra.mxu0 0.0
    %849 = vmatpush.msra.mxu0 0.0
    %850 = vmatpush.msra.mxu0 0.0
    %851 = vmatpush.msra.mxu0 0.0
    %852 = vmatpush.msra.mxu0 0.0
    %853 = vmatpush.msra.mxu0 0.0
    %854 = vmatpush.msra.mxu0 0.0
    %855 = vmatpush.msra.mxu0 %v193
    %856 = vmatmul.f32.gmra.mxu0 %v835
    %v857 = vpop.f32.mrf.mxu0
    %v858 = vadd.f32 0.0, %v857
    %859 = vmatmul.f32.gmra.mxu0 %v838
    %v860 = vpop.f32.mrf.mxu0
    %v861 = vadd.f32 0.0, %v860
    %862 = vdwg.mxu0
    %v863 = vmul.f32 %v858, 0.35355338
    %v864 = vmul.f32 %v861, 0.35355338
    %v865 = vsel %vm294, %v863, -inf
    %866 = vmax.xlane.f32.xlu0 %v865
    %v867 = vpop.xlane.xlu0 %866
    %v868 = vsel %vm294, %v864, -inf
    %869 = vmax.xlane.f32.xlu0 %v868
    %v870 = vpop.xlane.xlu0 %869
    %v871 = vsub.f32 %v863, %v867
    %v872 = vsub.f32 %v864, %v870
    %v873 = vmul.f32 %v871, 1.442695
    %v874 = vpow.pop %v873
    %v875 = vmul.f32 %v872, 1.442695
    %v876 = vpow.pop %v875
    %v877 = vsel %vm294, %v874, 0.0
    %878 = vadd.xlane.f32.xlu0 %v877
    %v879 = vpop.xlane.xlu0 %878
    %v880 = vsel %vm294, %v876, 0.0
    %881 = vadd.xlane.f32.xlu0 %v880
    %v882 = vpop.xlane.xlu0 %881
    %v883 = vrcp.pop %v879
    %v884 = vrcp.pop %v882
    %v885 = vmul.f32 %v874, %v883
    %v886 = vmul.f32 %v876, %v884
    %v888 = vsel %vm294, %v215, 0
    %v891 = vsel %vm294, %v885, 0
    %v894 = vsel %vm294, %v886, 0
    %896 = vmatpush.xpose.msra.mxu0 0.0
    %897 = vmatpush.xpose.msra.mxu0 0.0
    %898 = vmatpush.xpose.msra.mxu0 0.0
    %899 = vmatpush.xpose.msra.mxu0 0.0
    %900 = vmatpush.xpose.msra.mxu0 0.0
    %901 = vmatpush.xpose.msra.mxu0 0.0
    %902 = vmatpush.xpose.msra.mxu0 0.0
    %903 = vmatpush.xpose.msra.mxu0 0.0
    %904 = vmatpush.xpose.msra.mxu0 0.0
    %905 = vmatpush.xpose.msra.mxu0 0.0
    %906 = vmatpush.xpose.msra.mxu0 0.0
    %907 = vmatpush.xpose.msra.mxu0 0.0
    %908 = vmatpush.xpose.msra.mxu0 0.0
    %909 = vmatpush.xpose.msra.mxu0 0.0
    %910 = vmatpush.xpose.msra.mxu0 %v894
    %911 = vmatpush.xpose.msra.mxu0 %v891
    %912 = vmatmul.f32.gmra.mxu0 %v888
    %v913 = vpop.f32.mrf.mxu0
    %v914 = vadd.f32 0.0, %v913
    %915 = vdwg.mxu0
    %916 = vxpose.xlu0.b32.start [1/16] %v344, 128
    %917 = vxpose.xlu0.b32.cont [2/16] %v458, 128
    %918 = vxpose.xlu0.b32.cont [3/16] %v572, 128
    %919 = vxpose.xlu0.b32.cont [4/16] %v686, 128
    %920 = vxpose.xlu0.b32.cont [5/16] %v800, 128
    %921 = vxpose.xlu0.b32.cont [6/16] %v914, 128
    %922 = vxpose.xlu0.b32.cont [7/16] 0.0, 128
    %923 = vxpose.xlu0.b32.cont [8/16] 0.0, 128
    %924 = vxpose.xlu0.b32.cont [9/16] 0.0, 128
    %925 = vxpose.xlu0.b32.cont [10/16] 0.0, 128
    %926 = vxpose.xlu0.b32.cont [11/16] 0.0, 128
    %927 = vxpose.xlu0.b32.cont [12/16] 0.0, 128
    %928 = vxpose.xlu0.b32.cont [13/16] 0.0, 128
    %929 = vxpose.xlu0.b32.cont [14/16] 0.0, 128
    %930 = vxpose.xlu0.b32.cont [15/16] 0.0, 128
    %931 = vxpose.xlu0.b32.end [16/16] 0.0, 128
    %v932 = vpop.trf.xlu0
    %v933 = vpop.trf.xlu0
    %v934 = vpop.trf.xlu0
    %v935 = vpop.trf.xlu0
    %v936 = vpop.trf.xlu0
    %v937 = vpop.trf.xlu0
    %v938 = vpop.trf.xlu0
    %v939 = vpop.trf.xlu0
    %v940 = vpop.trf.xlu0
    %v941 = vpop.trf.xlu0
    %v942 = vpop.trf.xlu0
    %v943 = vpop.trf.xlu0
    %v944 = vpop.trf.xlu0
    %v945 = vpop.trf.xlu0
    %v946 = vpop.trf.xlu0
    %v947 = vpop.trf.xlu0
    %948 = vxpose.xlu0.b32.start [1/16] %v132, 128
    %949 = vxpose.xlu0.b32.cont [2/16] %v135, 128
    %950 = vxpose.xlu0.b32.cont [3/16] 0.0, 128
    %951 = vxpose.xlu0.b32.cont [4/16] 0.0, 128
    %952 = vxpose.xlu0.b32.cont [5/16] 0.0, 128
    %953 = vxpose.xlu0.b32.cont [6/16] 0.0, 128
    %954 = vxpose.xlu0.b32.cont [7/16] 0.0, 128
    %955 = vxpose.xlu0.b32.cont [8/16] 0.0, 128
    %956 = vxpose.xlu0.b32.cont [9/16] 0.0, 128
    %957 = vxpose.xlu0.b32.cont [10/16] 0.0, 128
    %958 = vxpose.xlu0.b32.cont [11/16] 0.0, 128
    %959 = vxpose.xlu0.b32.cont [12/16] 0.0, 128
    %960 = vxpose.xlu0.b32.cont [13/16] 0.0, 128
    %961 = vxpose.xlu0.b32.cont [14/16] 0.0, 128
    %962 = vxpose.xlu0.b32.cont [15/16] 0.0, 128
    %963 = vxpose.xlu0.b32.end [16/16] 0.0, 128
    %v964 = vpop.trf.xlu0
    %v965 = vpop.trf.xlu0
    %v966 = vpop.trf.xlu0
    %v967 = vpop.trf.xlu0
    %v968 = vpop.trf.xlu0
    %v969 = vpop.trf.xlu0
    %v970 = vpop.trf.xlu0
    %v971 = vpop.trf.xlu0
    %v972 = vpop.trf.xlu0
    %v973 = vpop.trf.xlu0
    %v974 = vpop.trf.xlu0
    %v975 = vpop.trf.xlu0
    %v976 = vpop.trf.xlu0
    %v977 = vpop.trf.xlu0
    %v978 = vpop.trf.xlu0
    %v979 = vpop.trf.xlu0
    %980 = vxpose.xlu0.b32.start [1/16] %v161, 128
    %981 = vxpose.xlu0.b32.cont [2/16] %v164, 128
    %982 = vxpose.xlu0.b32.cont [3/16] 0.0, 128
    %983 = vxpose.xlu0.b32.cont [4/16] 0.0, 128
    %984 = vxpose.xlu0.b32.cont [5/16] 0.0, 128
    %985 = vxpose.xlu0.b32.cont [6/16] 0.0, 128
    %986 = vxpose.xlu0.b32.cont [7/16] 0.0, 128
    %987 = vxpose.xlu0.b32.cont [8/16] 0.0, 128
    %988 = vxpose.xlu0.b32.cont [9/16] 0.0, 128
    %989 = vxpose.xlu0.b32.cont [10/16] 0.0, 128
    %990 = vxpose.xlu0.b32.cont [11/16] 0.0, 128
    %991 = vxpose.xlu0.b32.cont [12/16] 0.0, 128
    %992 = vxpose.xlu0.b32.cont [13/16] 0.0, 128
    %993 = vxpose.xlu0.b32.cont [14/16] 0.0, 128
    %994 = vxpose.xlu0.b32.cont [15/16] 0.0, 128
    %995 = vxpose.xlu0.b32.end [16/16] 0.0, 128
    %v996 = vpop.trf.xlu0
    %v997 = vpop.trf.xlu0
    %v998 = vpop.trf.xlu0
    %v999 = vpop.trf.xlu0
    %v1000 = vpop.trf.xlu0
    %v1001 = vpop.trf.xlu0
    %v1002 = vpop.trf.xlu0
    %v1003 = vpop.trf.xlu0
    %v1004 = vpop.trf.xlu0
    %v1005 = vpop.trf.xlu0
    %v1006 = vpop.trf.xlu0
    %v1007 = vpop.trf.xlu0
    %v1008 = vpop.trf.xlu0
    %v1009 = vpop.trf.xlu0
    %v1010 = vpop.trf.xlu0
    %v1011 = vpop.trf.xlu0
    %1012 = vxpose.xlu0.b32.start [1/16] %v964, 128
    %1013 = vxpose.xlu0.b32.cont [2/16] 0.0, 128
    %1014 = vxpose.xlu0.b32.cont [3/16] 0.0, 128
    %1015 = vxpose.xlu0.b32.cont [4/16] 0.0, 128
    %1016 = vxpose.xlu0.b32.cont [5/16] 0.0, 128
    %1017 = vxpose.xlu0.b32.cont [6/16] 0.0, 128
    %1018 = vxpose.xlu0.b32.cont [7/16] 0.0, 128
    %1019 = vxpose.xlu0.b32.cont [8/16] 0.0, 128
    %1020 = vxpose.xlu0.b32.cont [9/16] 0.0, 128
    %1021 = vxpose.xlu0.b32.cont [10/16] 0.0, 128
    %1022 = vxpose.xlu0.b32.cont [11/16] 0.0, 128
    %1023 = vxpose.xlu0.b32.cont [12/16] 0.0, 128
    %1024 = vxpose.xlu0.b32.cont [13/16] 0.0, 128
    %1025 = vxpose.xlu0.b32.cont [14/16] 0.0, 128
    %1026 = vxpose.xlu0.b32.cont [15/16] 0.0, 128
    %1027 = vxpose.xlu0.b32.end [16/16] 0.0, 128
    %v1028 = vpop.trf.xlu0
    %v1029 = vpop.trf.xlu0
    %v1030 = vpop.trf.xlu0
    %v1031 = vpop.trf.xlu0
    %v1032 = vpop.trf.xlu0
    %v1033 = vpop.trf.xlu0
    %v1034 = vpop.trf.xlu0
    %v1035 = vpop.trf.xlu0
    %v1036 = vpop.trf.xlu0
    %v1037 = vpop.trf.xlu0
    %v1038 = vpop.trf.xlu0
    %v1039 = vpop.trf.xlu0
    %v1040 = vpop.trf.xlu0
    %v1041 = vpop.trf.xlu0
    %v1042 = vpop.trf.xlu0
    %v1043 = vpop.trf.xlu0
    %v1045 = vsel %vm262, %v1028, 0
    %v1048 = vsel %vm262, %v1029, 0
    %1050 = vmatpush.msra.mxu0 0.0
    %1051 = vmatpush.msra.mxu0 0.0
    %1052 = vmatpush.msra.mxu0 0.0
    %1053 = vmatpush.msra.mxu0 0.0
    %1054 = vmatpush.msra.mxu0 0.0
    %1055 = vmatpush.msra.mxu0 0.0
    %1056 = vmatpush.msra.mxu0 0.0
    %1057 = vmatpush.msra.mxu0 0.0
    %1058 = vmatpush.msra.mxu0 0.0
    %1059 = vmatpush.msra.mxu0 0.0
    %1060 = vmatpush.msra.mxu0 0.0
    %1061 = vmatpush.msra.mxu0 0.0
    %1062 = vmatpush.msra.mxu0 0.0
    %1063 = vmatpush.msra.mxu0 0.0
    %1064 = vmatpush.msra.mxu0 0.0
    %1065 = vmatpush.msra.mxu0 %v970
    %1066 = vmatmul.f32.gmra.mxu0 %v1045
    %v1067 = vpop.f32.mrf.mxu0
    %v1068 = vadd.f32 0.0, %v1067
    %1069 = vmatmul.f32.gmra.mxu0 %v1048
    %v1070 = vpop.f32.mrf.mxu0
    %v1071 = vadd.f32 0.0, %v1070
    %1072 = vdwg.mxu0
    %v1073 = vmul.f32 %v1068, 0.35355338
    %v1074 = vmul.f32 %v1071, 0.35355338
    %v1075 = vsel %vm294, %v1073, -inf
    %1076 = vmax.xlane.f32.xlu0 %v1075
    %v1077 = vpop.xlane.xlu0 %1076
    %v1078 = vsel %vm294, %v1074, -inf
    %1079 = vmax.xlane.f32.xlu0 %v1078
    %v1080 = vpop.xlane.xlu0 %1079
    %v1081 = vsub.f32 %v1073, %v1077
    %v1082 = vsub.f32 %v1074, %v1080
    %v1083 = vmul.f32 %v1081, 1.442695
    %v1084 = vpow.pop %v1083
    %v1085 = vmul.f32 %v1082, 1.442695
    %v1086 = vpow.pop %v1085
    %v1087 = vsel %vm294, %v1084, 0.0
    %1088 = vadd.xlane.f32.xlu0 %v1087
    %v1089 = vpop.xlane.xlu0 %1088
    %v1090 = vsel %vm294, %v1086, 0.0
    %1091 = vadd.xlane.f32.xlu0 %v1090
    %v1092 = vpop.xlane.xlu0 %1091
    %v1093 = vrcp.pop %v1089
    %v1094 = vrcp.pop %v1092
    %v1095 = vmul.f32 %v1084, %v1093
    %v1096 = vmul.f32 %v1086, %v1094
    %v1098 = vsel %vm294, %v976, 0
    %v1101 = vsel %vm294, %v1095, 0
    %v1104 = vsel %vm294, %v1096, 0
    %1106 = vmatpush.xpose.msra.mxu0 0.0
    %1107 = vmatpush.xpose.msra.mxu0 0.0
    %1108 = vmatpush.xpose.msra.mxu0 0.0
    %1109 = vmatpush.xpose.msra.mxu0 0.0
    %1110 = vmatpush.xpose.msra.mxu0 0.0
    %1111 = vmatpush.xpose.msra.mxu0 0.0
    %1112 = vmatpush.xpose.msra.mxu0 0.0
    %1113 = vmatpush.xpose.msra.mxu0 0.0
    %1114 = vmatpush.xpose.msra.mxu0 0.0
    %1115 = vmatpush.xpose.msra.mxu0 0.0
    %1116 = vmatpush.xpose.msra.mxu0 0.0
    %1117 = vmatpush.xpose.msra.mxu0 0.0
    %1118 = vmatpush.xpose.msra.mxu0 0.0
    %1119 = vmatpush.xpose.msra.mxu0 0.0
    %1120 = vmatpush.xpose.msra.mxu0 %v1104
    %1121 = vmatpush.xpose.msra.mxu0 %v1101
    %1122 = vmatmul.f32.gmra.mxu0 %v1098
    %v1123 = vpop.f32.mrf.mxu0
    %v1124 = vadd.f32 0.0, %v1123
    %1125 = vdwg.mxu0
    %1126 = vxpose.xlu0.b32.start [1/16] %v965, 128
    %1127 = vxpose.xlu0.b32.cont [2/16] 0.0, 128
    %1128 = vxpose.xlu0.b32.cont [3/16] 0.0, 128
    %1129 = vxpose.xlu0.b32.cont [4/16] 0.0, 128
    %1130 = vxpose.xlu0.b32.cont [5/16] 0.0, 128
    %1131 = vxpose.xlu0.b32.cont [6/16] 0.0, 128
    %1132 = vxpose.xlu0.b32.cont [7/16] 0.0, 128
    %1133 = vxpose.xlu0.b32.cont [8/16] 0.0, 128
    %1134 = vxpose.xlu0.b32.cont [9/16] 0.0, 128
    %1135 = vxpose.xlu0.b32.cont [10/16] 0.0, 128
    %1136 = vxpose.xlu0.b32.cont [11/16] 0.0, 128
    %1137 = vxpose.xlu0.b32.cont [12/16] 0.0, 128
    %1138 = vxpose.xlu0.b32.cont [13/16] 0.0, 128
    %1139 = vxpose.xlu0.b32.cont [14/16] 0.0, 128
    %1140 = vxpose.xlu0.b32.cont [15/16] 0.0, 128
    %1141 = vxpose.xlu0.b32.end [16/16] 0.0, 128
    %v1142 = vpop.trf.xlu0
    %v1143 = vpop.trf.xlu0
    %v1144 = vpop.trf.xlu0
    %v1145 = vpop.trf.xlu0
    %v1146 = vpop.trf.xlu0
    %v1147 = vpop.trf.xlu0
    %v1148 = vpop.trf.xlu0
    %v1149 = vpop.trf.xlu0
    %v1150 = vpop.trf.xlu0
    %v1151 = vpop.trf.xlu0
    %v1152 = vpop.trf.xlu0
    %v1153 = vpop.trf.xlu0
    %v1154 = vpop.trf.xlu0
    %v1155 = vpop.trf.xlu0
    %v1156 = vpop.trf.xlu0
    %v1157 = vpop.trf.xlu0
    %v1159 = vsel %vm262, %v1142, 0
    %v1162 = vsel %vm262, %v1143, 0
    %1164 = vmatpush.msra.mxu0 0.0
    %1165 = vmatpush.msra.mxu0 0.0
    %1166 = vmatpush.msra.mxu0 0.0
    %1167 = vmatpush.msra.mxu0 0.0
    %1168 = vmatpush.msra.mxu0 0.0
    %1169 = vmatpush.msra.mxu0 0.0
    %1170 = vmatpush.msra.mxu0 0.0
    %1171 = vmatpush.msra.mxu0 0.0
    %1172 = vmatpush.msra.mxu0 0.0
    %1173 = vmatpush.msra.mxu0 0.0
    %1174 = vmatpush.msra.mxu0 0.0
    %1175 = vmatpush.msra.mxu0 0.0
    %1176 = vmatpush.msra.mxu0 0.0
    %1177 = vmatpush.msra.mxu0 0.0
    %1178 = vmatpush.msra.mxu0 0.0
    %1179 = vmatpush.msra.mxu0 %v971
    %1180 = vmatmul.f32.gmra.mxu0 %v1159
    %v1181 = vpop.f32.mrf.mxu0
    %v1182 = vadd.f32 0.0, %v1181
    %1183 = vmatmul.f32.gmra.mxu0 %v1162
    %v1184 = vpop.f32.mrf.mxu0
    %v1185 = vadd.f32 0.0, %v1184
    %1186 = vdwg.mxu0
    %v1187 = vmul.f32 %v1182, 0.35355338
    %v1188 = vmul.f32 %v1185, 0.35355338
    %v1189 = vsel %vm294, %v1187, -inf
    %1190 = vmax.xlane.f32.xlu0 %v1189
    %v1191 = vpop.xlane.xlu0 %1190
    %v1192 = vsel %vm294, %v1188, -inf
    %1193 = vmax.xlane.f32.xlu0 %v1192
    %v1194 = vpop.xlane.xlu0 %1193
    %v1195 = vsub.f32 %v1187, %v1191
    %v1196 = vsub.f32 %v1188, %v1194
    %v1197 = vmul.f32 %v1195, 1.442695
    %v1198 = vpow.pop %v1197
    %v1199 = vmul.f32 %v1196, 1.442695
    %v1200 = vpow.pop %v1199
    %v1201 = vsel %vm294, %v1198, 0.0
    %1202 = vadd.xlane.f32.xlu0 %v1201
    %v1203 = vpop.xlane.xlu0 %1202
    %v1204 = vsel %vm294, %v1200, 0.0
    %1205 = vadd.xlane.f32.xlu0 %v1204
    %v1206 = vpop.xlane.xlu0 %1205
    %v1207 = vrcp.pop %v1203
    %v1208 = vrcp.pop %v1206
    %v1209 = vmul.f32 %v1198, %v1207
    %v1210 = vmul.f32 %v1200, %v1208
    %v1212 = vsel %vm294, %v977, 0
    %v1215 = vsel %vm294, %v1209, 0
    %v1218 = vsel %vm294, %v1210, 0
    %1220 = vmatpush.xpose.msra.mxu0 0.0
    %1221 = vmatpush.xpose.msra.mxu0 0.0
    %1222 = vmatpush.xpose.msra.mxu0 0.0
    %1223 = vmatpush.xpose.msra.mxu0 0.0
    %1224 = vmatpush.xpose.msra.mxu0 0.0
    %1225 = vmatpush.xpose.msra.mxu0 0.0
    %1226 = vmatpush.xpose.msra.mxu0 0.0
    %1227 = vmatpush.xpose.msra.mxu0 0.0
    %1228 = vmatpush.xpose.msra.mxu0 0.0
    %1229 = vmatpush.xpose.msra.mxu0 0.0
    %1230 = vmatpush.xpose.msra.mxu0 0.0
    %1231 = vmatpush.xpose.msra.mxu0 0.0
    %1232 = vmatpush.xpose.msra.mxu0 0.0
    %1233 = vmatpush.xpose.msra.mxu0 0.0
    %1234 = vmatpush.xpose.msra.mxu0 %v1218
    %1235 = vmatpush.xpose.msra.mxu0 %v1215
    %1236 = vmatmul.f32.gmra.mxu0 %v1212
    %v1237 = vpop.f32.mrf.mxu0
    %v1238 = vadd.f32 0.0, %v1237
    %1239 = vdwg.mxu0
    %1240 = vxpose.xlu0.b32.start [1/16] %v966, 128
    %1241 = vxpose.xlu0.b32.cont [2/16] 0.0, 128
    %1242 = vxpose.xlu0.b32.cont [3/16] 0.0, 128
    %1243 = vxpose.xlu0.b32.cont [4/16] 0.0, 128
    %1244 = vxpose.xlu0.b32.cont [5/16] 0.0, 128
    %1245 = vxpose.xlu0.b32.cont [6/16] 0.0, 128
    %1246 = vxpose.xlu0.b32.cont [7/16] 0.0, 128
    %1247 = vxpose.xlu0.b32.cont [8/16] 0.0, 128
    %1248 = vxpose.xlu0.b32.cont [9/16] 0.0, 128
    %1249 = vxpose.xlu0.b32.cont [10/16] 0.0, 128
    %1250 = vxpose.xlu0.b32.cont [11/16] 0.0, 128
    %1251 = vxpose.xlu0.b32.cont [12/16] 0.0, 128
    %1252 = vxpose.xlu0.b32.cont [13/16] 0.0, 128
    %1253 = vxpose.xlu0.b32.cont [14/16] 0.0, 128
    %1254 = vxpose.xlu0.b32.cont [15/16] 0.0, 128
    %1255 = vxpose.xlu0.b32.end [16/16] 0.0, 128
    %v1256 = vpop.trf.xlu0
    %v1257 = vpop.trf.xlu0
    %v1258 = vpop.trf.xlu0
    %v1259 = vpop.trf.xlu0
    %v1260 = vpop.trf.xlu0
    %v1261 = vpop.trf.xlu0
    %v1262 = vpop.trf.xlu0
    %v1263 = vpop.trf.xlu0
    %v1264 = vpop.trf.xlu0
    %v1265 = vpop.trf.xlu0
    %v1266 = vpop.trf.xlu0
    %v1267 = vpop.trf.xlu0
    %v1268 = vpop.trf.xlu0
    %v1269 = vpop.trf.xlu0
    %v1270 = vpop.trf.xlu0
    %v1271 = vpop.trf.xlu0
    %v1273 = vsel %vm262, %v1256, 0
    %v1276 = vsel %vm262, %v1257, 0
    %1278 = vmatpush.msra.mxu0 0.0
    %1279 = vmatpush.msra.mxu0 0.0
    %1280 = vmatpush.msra.mxu0 0.0
    %1281 = vmatpush.msra.mxu0 0.0
    %1282 = vmatpush.msra.mxu0 0.0
    %1283 = vmatpush.msra.mxu0 0.0
    %1284 = vmatpush.msra.mxu0 0.0
    %1285 = vmatpush.msra.mxu0 0.0
    %1286 = vmatpush.msra.mxu0 0.0
    %1287 = vmatpush.msra.mxu0 0.0
    %1288 = vmatpush.msra.mxu0 0.0
    %1289 = vmatpush.msra.mxu0 0.0
    %1290 = vmatpush.msra.mxu0 0.0
    %1291 = vmatpush.msra.mxu0 0.0
    %1292 = vmatpush.msra.mxu0 0.0
    %1293 = vmatpush.msra.mxu0 %v972
    %1294 = vmatmul.f32.gmra.mxu0 %v1273
    %v1295 = vpop.f32.mrf.mxu0
    %v1296 = vadd.f32 0.0, %v1295
    %1297 = vmatmul.f32.gmra.mxu0 %v1276
    %v1298 = vpop.f32.mrf.mxu0
    %v1299 = vadd.f32 0.0, %v1298
    %1300 = vdwg.mxu0
    %v1301 = vmul.f32 %v1296, 0.35355338
    %v1302 = vmul.f32 %v1299, 0.35355338
    %v1303 = vsel %vm294, %v1301, -inf
    %1304 = vmax.xlane.f32.xlu0 %v1303
    %v1305 = vpop.xlane.xlu0 %1304
    %v1306 = vsel %vm294, %v1302, -inf
    %1307 = vmax.xlane.f32.xlu0 %v1306
    %v1308 = vpop.xlane.xlu0 %1307
    %v1309 = vsub.f32 %v1301, %v1305
    %v1310 = vsub.f32 %v1302, %v1308
    %v1311 = vmul.f32 %v1309, 1.442695
    %v1312 = vpow.pop %v1311
    %v1313 = vmul.f32 %v1310, 1.442695
    %v1314 = vpow.pop %v1313
    %v1315 = vsel %vm294, %v1312, 0.0
    %1316 = vadd.xlane.f32.xlu0 %v1315
    %v1317 = vpop.xlane.xlu0 %1316
    %v1318 = vsel %vm294, %v1314, 0.0
    %1319 = vadd.xlane.f32.xlu0 %v1318
    %v1320 = vpop.xlane.xlu0 %1319
    %v1321 = vrcp.pop %v1317
    %v1322 = vrcp.pop %v1320
    %v1323 = vmul.f32 %v1312, %v1321
    %v1324 = vmul.f32 %v1314, %v1322
    %v1326 = vsel %vm294, %v978, 0
    %v1329 = vsel %vm294, %v1323, 0
    %v1332 = vsel %vm294, %v1324, 0
    %1334 = vmatpush.xpose.msra.mxu0 0.0
    %1335 = vmatpush.xpose.msra.mxu0 0.0
    %1336 = vmatpush.xpose.msra.mxu0 0.0
    %1337 = vmatpush.xpose.msra.mxu0 0.0
    %1338 = vmatpush.xpose.msra.mxu0 0.0
    %1339 = vmatpush.xpose.msra.mxu0 0.0
    %1340 = vmatpush.xpose.msra.mxu0 0.0
    %1341 = vmatpush.xpose.msra.mxu0 0.0
    %1342 = vmatpush.xpose.msra.mxu0 0.0
    %1343 = vmatpush.xpose.msra.mxu0 0.0
    %1344 = vmatpush.xpose.msra.mxu0 0.0
    %1345 = vmatpush.xpose.msra.mxu0 0.0
    %1346 = vmatpush.xpose.msra.mxu0 0.0
    %1347 = vmatpush.xpose.msra.mxu0 0.0
    %1348 = vmatpush.xpose.msra.mxu0 %v1332
    %1349 = vmatpush.xpose.msra.mxu0 %v1329
    %1350 = vmatmul.f32.gmra.mxu0 %v1326
    %v1351 = vpop.f32.mrf.mxu0
    %v1352 = vadd.f32 0.0, %v1351
    %1353 = vdwg.mxu0
    %1354 = vxpose.xlu0.b32.start [1/16] %v967, 128
    %1355 = vxpose.xlu0.b32.cont [2/16] 0.0, 128
    %1356 = vxpose.xlu0.b32.cont [3/16] 0.0, 128
    %1357 = vxpose.xlu0.b32.cont [4/16] 0.0, 128
    %1358 = vxpose.xlu0.b32.cont [5/16] 0.0, 128
    %1359 = vxpose.xlu0.b32.cont [6/16] 0.0, 128
    %1360 = vxpose.xlu0.b32.cont [7/16] 0.0, 128
    %1361 = vxpose.xlu0.b32.cont [8/16] 0.0, 128
    %1362 = vxpose.xlu0.b32.cont [9/16] 0.0, 128
    %1363 = vxpose.xlu0.b32.cont [10/16] 0.0, 128
    %1364 = vxpose.xlu0.b32.cont [11/16] 0.0, 128
    %1365 = vxpose.xlu0.b32.cont [12/16] 0.0, 128
    %1366 = vxpose.xlu0.b32.cont [13/16] 0.0, 128
    %1367 = vxpose.xlu0.b32.cont [14/16] 0.0, 128
    %1368 = vxpose.xlu0.b32.cont [15/16] 0.0, 128
    %1369 = vxpose.xlu0.b32.end [16/16] 0.0, 128
    %v1370 = vpop.trf.xlu0
    %v1371 = vpop.trf.xlu0
    %v1372 = vpop.trf.xlu0
    %v1373 = vpop.trf.xlu0
    %v1374 = vpop.trf.xlu0
    %v1375 = vpop.trf.xlu0
    %v1376 = vpop.trf.xlu0
    %v1377 = vpop.trf.xlu0
    %v1378 = vpop.trf.xlu0
    %v1379 = vpop.trf.xlu0
    %v1380 = vpop.trf.xlu0
    %v1381 = vpop.trf.xlu0
    %v1382 = vpop.trf.xlu0
    %v1383 = vpop.trf.xlu0
    %v1384 = vpop.trf.xlu0
    %v1385 = vpop.trf.xlu0
    %v1387 = vsel %vm262, %v1370, 0
    %v1390 = vsel %vm262, %v1371, 0
    %1392 = vmatpush.msra.mxu0 0.0
    %1393 = vmatpush.msra.mxu0 0.0
    %1394 = vmatpush.msra.mxu0 0.0
    %1395 = vmatpush.msra.mxu0 0.0
    %1396 = vmatpush.msra.mxu0 0.0
    %1397 = vmatpush.msra.mxu0 0.0
    %1398 = vmatpush.msra.mxu0 0.0
    %1399 = vmatpush.msra.mxu0 0.0
    %1400 = vmatpush.msra.mxu0 0.0
    %1401 = vmatpush.msra.mxu0 0.0
    %1402 = vmatpush.msra.mxu0 0.0
    %1403 = vmatpush.msra.mxu0 0.0
    %1404 = vmatpush.msra.mxu0 0.0
    %1405 = vmatpush.msra.mxu0 0.0
    %1406 = vmatpush.msra.mxu0 0.0
    %1407 = vmatpush.msra.mxu0 %v973
    %1408 = vmatmul.f32.gmra.mxu0 %v1387
    %v1409 = vpop.f32.mrf.mxu0
    %v1410 = vadd.f32 0.0, %v1409
    %1411 = vmatmul.f32.gmra.mxu0 %v1390
    %v1412 = vpop.f32.mrf.mxu0
    %v1413 = vadd.f32 0.0, %v1412
    %1414 = vdwg.mxu0
    %v1415 = vmul.f32 %v1410, 0.35355338
    %v1416 = vmul.f32 %v1413, 0.35355338
    %v1417 = vsel %vm294, %v1415, -inf
    %1418 = vmax.xlane.f32.xlu0 %v1417
    %v1419 = vpop.xlane.xlu0 %1418
    %v1420 = vsel %vm294, %v1416, -inf
    %1421 = vmax.xlane.f32.xlu0 %v1420
    %v1422 = vpop.xlane.xlu0 %1421
    %v1423 = vsub.f32 %v1415, %v1419
    %v1424 = vsub.f32 %v1416, %v1422
    %v1425 = vmul.f32 %v1423, 1.442695
    %v1426 = vpow.pop %v1425
    %v1427 = vmul.f32 %v1424, 1.442695
    %v1428 = vpow.pop %v1427
    %v1429 = vsel %vm294, %v1426, 0.0
    %1430 = vadd.xlane.f32.xlu0 %v1429
    %v1431 = vpop.xlane.xlu0 %1430
    %v1432 = vsel %vm294, %v1428, 0.0
    %1433 = vadd.xlane.f32.xlu0 %v1432
    %v1434 = vpop.xlane.xlu0 %1433
    %v1435 = vrcp.pop %v1431
    %v1436 = vrcp.pop %v1434
    %v1437 = vmul.f32 %v1426, %v1435
    %v1438 = vmul.f32 %v1428, %v1436
    %v1440 = vsel %vm294, %v979, 0
    %v1443 = vsel %vm294, %v1437, 0
    %v1446 = vsel %vm294, %v1438, 0
    %1448 = vmatpush.xpose.msra.mxu0 0.0
    %1449 = vmatpush.xpose.msra.mxu0 0.0
    %1450 = vmatpush.xpose.msra.mxu0 0.0
    %1451 = vmatpush.xpose.msra.mxu0 0.0
    %1452 = vmatpush.xpose.msra.mxu0 0.0
    %1453 = vmatpush.xpose.msra.mxu0 0.0
    %1454 = vmatpush.xpose.msra.mxu0 0.0
    %1455 = vmatpush.xpose.msra.mxu0 0.0
    %1456 = vmatpush.xpose.msra.mxu0 0.0
    %1457 = vmatpush.xpose.msra.mxu0 0.0
    %1458 = vmatpush.xpose.msra.mxu0 0.0
    %1459 = vmatpush.xpose.msra.mxu0 0.0
    %1460 = vmatpush.xpose.msra.mxu0 0.0
    %1461 = vmatpush.xpose.msra.mxu0 0.0
    %1462 = vmatpush.xpose.msra.mxu0 %v1446
    %1463 = vmatpush.xpose.msra.mxu0 %v1443
    %1464 = vmatmul.f32.gmra.mxu0 %v1440
    %v1465 = vpop.f32.mrf.mxu0
    %v1466 = vadd.f32 0.0, %v1465
    %1467 = vdwg.mxu0
    %1468 = vxpose.xlu0.b32.start [1/16] %v968, 128
    %1469 = vxpose.xlu0.b32.cont [2/16] 0.0, 128
    %1470 = vxpose.xlu0.b32.cont [3/16] 0.0, 128
    %1471 = vxpose.xlu0.b32.cont [4/16] 0.0, 128
    %1472 = vxpose.xlu0.b32.cont [5/16] 0.0, 128
    %1473 = vxpose.xlu0.b32.cont [6/16] 0.0, 128
    %1474 = vxpose.xlu0.b32.cont [7/16] 0.0, 128
    %1475 = vxpose.xlu0.b32.cont [8/16] 0.0, 128
    %1476 = vxpose.xlu0.b32.cont [9/16] 0.0, 128
    %1477 = vxpose.xlu0.b32.cont [10/16] 0.0, 128
    %1478 = vxpose.xlu0.b32.cont [11/16] 0.0, 128
    %1479 = vxpose.xlu0.b32.cont [12/16] 0.0, 128
    %1480 = vxpose.xlu0.b32.cont [13/16] 0.0, 128
    %1481 = vxpose.xlu0.b32.cont [14/16] 0.0, 128
    %1482 = vxpose.xlu0.b32.cont [15/16] 0.0, 128
    %1483 = vxpose.xlu0.b32.end [16/16] 0.0, 128
    %v1484 = vpop.trf.xlu0
    %v1485 = vpop.trf.xlu0
    %v1486 = vpop.trf.xlu0
    %v1487 = vpop.trf.xlu0
    %v1488 = vpop.trf.xlu0
    %v1489 = vpop.trf.xlu0
    %v1490 = vpop.trf.xlu0
    %v1491 = vpop.trf.xlu0
    %v1492 = vpop.trf.xlu0
    %v1493 = vpop.trf.xlu0
    %v1494 = vpop.trf.xlu0
    %v1495 = vpop.trf.xlu0
    %v1496 = vpop.trf.xlu0
    %v1497 = vpop.trf.xlu0
    %v1498 = vpop.trf.xlu0
    %v1499 = vpop.trf.xlu0
    %v1501 = vsel %vm262, %v1484, 0
    %v1504 = vsel %vm262, %v1485, 0
    %1506 = vmatpush.msra.mxu0 0.0
    %1507 = vmatpush.msra.mxu0 0.0
    %1508 = vmatpush.msra.mxu0 0.0
    %1509 = vmatpush.msra.mxu0 0.0
    %1510 = vmatpush.msra.mxu0 0.0
    %1511 = vmatpush.msra.mxu0 0.0
    %1512 = vmatpush.msra.mxu0 0.0
    %1513 = vmatpush.msra.mxu0 0.0
    %1514 = vmatpush.msra.mxu0 0.0
    %1515 = vmatpush.msra.mxu0 0.0
    %1516 = vmatpush.msra.mxu0 0.0
    %1517 = vmatpush.msra.mxu0 0.0
    %1518 = vmatpush.msra.mxu0 0.0
    %1519 = vmatpush.msra.mxu0 0.0
    %1520 = vmatpush.msra.mxu0 0.0
    %1521 = vmatpush.msra.mxu0 %v974
    %1522 = vmatmul.f32.gmra.mxu0 %v1501
    %v1523 = vpop.f32.mrf.mxu0
    %v1524 = vadd.f32 0.0, %v1523
    %1525 = vmatmul.f32.gmra.mxu0 %v1504
    %v1526 = vpop.f32.mrf.mxu0
    %v1527 = vadd.f32 0.0, %v1526
    %1528 = vdwg.mxu0
    %v1529 = vmul.f32 %v1524, 0.35355338
    %v1530 = vmul.f32 %v1527, 0.35355338
    %v1531 = vsel %vm294, %v1529, -inf
    %1532 = vmax.xlane.f32.xlu0 %v1531
    %v1533 = vpop.xlane.xlu0 %1532
    %v1534 = vsel %vm294, %v1530, -inf
    %1535 = vmax.xlane.f32.xlu0 %v1534
    %v1536 = vpop.xlane.xlu0 %1535
    %v1537 = vsub.f32 %v1529, %v1533
    %v1538 = vsub.f32 %v1530, %v1536
    %v1539 = vmul.f32 %v1537, 1.442695
    %v1540 = vpow.pop %v1539
    %v1541 = vmul.f32 %v1538, 1.442695
    %v1542 = vpow.pop %v1541
    %v1543 = vsel %vm294, %v1540, 0.0
    %1544 = vadd.xlane.f32.xlu0 %v1543
    %v1545 = vpop.xlane.xlu0 %1544
    %v1546 = vsel %vm294, %v1542, 0.0
    %1547 = vadd.xlane.f32.xlu0 %v1546
    %v1548 = vpop.xlane.xlu0 %1547
    %v1549 = vrcp.pop %v1545
    %v1550 = vrcp.pop %v1548
    %v1551 = vmul.f32 %v1540, %v1549
    %v1552 = vmul.f32 %v1542, %v1550
    %v1554 = vsel %vm294, %v996, 0
    %v1557 = vsel %vm294, %v1551, 0
    %v1560 = vsel %vm294, %v1552, 0
    %1562 = vmatpush.xpose.msra.mxu0 0.0
    %1563 = vmatpush.xpose.msra.mxu0 0.0
    %1564 = vmatpush.xpose.msra.mxu0 0.0
    %1565 = vmatpush.xpose.msra.mxu0 0.0
    %1566 = vmatpush.xpose.msra.mxu0 0.0
    %1567 = vmatpush.xpose.msra.mxu0 0.0
    %1568 = vmatpush.xpose.msra.mxu0 0.0
    %1569 = vmatpush.xpose.msra.mxu0 0.0
    %1570 = vmatpush.xpose.msra.mxu0 0.0
    %1571 = vmatpush.xpose.msra.mxu0 0.0
    %1572 = vmatpush.xpose.msra.mxu0 0.0
    %1573 = vmatpush.xpose.msra.mxu0 0.0
    %1574 = vmatpush.xpose.msra.mxu0 0.0
    %1575 = vmatpush.xpose.msra.mxu0 0.0
    %1576 = vmatpush.xpose.msra.mxu0 %v1560
    %1577 = vmatpush.xpose.msra.mxu0 %v1557
    %1578 = vmatmul.f32.gmra.mxu0 %v1554
    %v1579 = vpop.f32.mrf.mxu0
    %v1580 = vadd.f32 0.0, %v1579
    %1581 = vdwg.mxu0
    %1582 = vxpose.xlu0.b32.start [1/16] %v969, 128
    %1583 = vxpose.xlu0.b32.cont [2/16] 0.0, 128
    %1584 = vxpose.xlu0.b32.cont [3/16] 0.0, 128
    %1585 = vxpose.xlu0.b32.cont [4/16] 0.0, 128
    %1586 = vxpose.xlu0.b32.cont [5/16] 0.0, 128
    %1587 = vxpose.xlu0.b32.cont [6/16] 0.0, 128
    %1588 = vxpose.xlu0.b32.cont [7/16] 0.0, 128
    %1589 = vxpose.xlu0.b32.cont [8/16] 0.0, 128
    %1590 = vxpose.xlu0.b32.cont [9/16] 0.0, 128
    %1591 = vxpose.xlu0.b32.cont [10/16] 0.0, 128
    %1592 = vxpose.xlu0.b32.cont [11/16] 0.0, 128
    %1593 = vxpose.xlu0.b32.cont [12/16] 0.0, 128
    %1594 = vxpose.xlu0.b32.cont [13/16] 0.0, 128
    %1595 = vxpose.xlu0.b32.cont [14/16] 0.0, 128
    %1596 = vxpose.xlu0.b32.cont [15/16] 0.0, 128
    %1597 = vxpose.xlu0.b32.end [16/16] 0.0, 128
    %v1598 = vpop.trf.xlu0
    %v1599 = vpop.trf.xlu0
    %v1600 = vpop.trf.xlu0
    %v1601 = vpop.trf.xlu0
    %v1602 = vpop.trf.xlu0
    %v1603 = vpop.trf.xlu0
    %v1604 = vpop.trf.xlu0
    %v1605 = vpop.trf.xlu0
    %v1606 = vpop.trf.xlu0
    %v1607 = vpop.trf.xlu0
    %v1608 = vpop.trf.xlu0
    %v1609 = vpop.trf.xlu0
    %v1610 = vpop.trf.xlu0
    %v1611 = vpop.trf.xlu0
    %v1612 = vpop.trf.xlu0
    %v1613 = vpop.trf.xlu0
    %v1615 = vsel %vm262, %v1598, 0
    %v1618 = vsel %vm262, %v1599, 0
    %1620 = vmatpush.msra.mxu0 0.0
    %1621 = vmatpush.msra.mxu0 0.0
    %1622 = vmatpush.msra.mxu0 0.0
    %1623 = vmatpush.msra.mxu0 0.0
    %1624 = vmatpush.msra.mxu0 0.0
    %1625 = vmatpush.msra.mxu0 0.0
    %1626 = vmatpush.msra.mxu0 0.0
    %1627 = vmatpush.msra.mxu0 0.0
    %1628 = vmatpush.msra.mxu0 0.0
    %1629 = vmatpush.msra.mxu0 0.0
    %1630 = vmatpush.msra.mxu0 0.0
    %1631 = vmatpush.msra.mxu0 0.0
    %1632 = vmatpush.msra.mxu0 0.0
    %1633 = vmatpush.msra.mxu0 0.0
    %1634 = vmatpush.msra.mxu0 0.0
    %1635 = vmatpush.msra.mxu0 %v975
    %1636 = vmatmul.f32.gmra.mxu0 %v1615
    %v1637 = vpop.f32.mrf.mxu0
    %v1638 = vadd.f32 0.0, %v1637
    %1639 = vmatmul.f32.gmra.mxu0 %v1618
    %v1640 = vpop.f32.mrf.mxu0
    %v1641 = vadd.f32 0.0, %v1640
    %1642 = vdwg.mxu0
    %v1643 = vmul.f32 %v1638, 0.35355338
    %v1644 = vmul.f32 %v1641, 0.35355338
    %v1645 = vsel %vm294, %v1643, -inf
    %1646 = vmax.xlane.f32.xlu0 %v1645
    %v1647 = vpop.xlane.xlu0 %1646
    %v1648 = vsel %vm294, %v1644, -inf
    %1649 = vmax.xlane.f32.xlu0 %v1648
    %v1650 = vpop.xlane.xlu0 %1649
    %v1651 = vsub.f32 %v1643, %v1647
    %v1652 = vsub.f32 %v1644, %v1650
    %v1653 = vmul.f32 %v1651, 1.442695
    %v1654 = vpow.pop %v1653
    %v1655 = vmul.f32 %v1652, 1.442695
    %v1656 = vpow.pop %v1655
    %v1657 = vsel %vm294, %v1654, 0.0
    %1658 = vadd.xlane.f32.xlu0 %v1657
    %v1659 = vpop.xlane.xlu0 %1658
    %v1660 = vsel %vm294, %v1656, 0.0
    %1661 = vadd.xlane.f32.xlu0 %v1660
    %v1662 = vpop.xlane.xlu0 %1661
    %v1663 = vrcp.pop %v1659
    %v1664 = vrcp.pop %v1662
    %v1665 = vmul.f32 %v1654, %v1663
    %v1666 = vmul.f32 %v1656, %v1664
    %v1668 = vsel %vm294, %v997, 0
    %v1671 = vsel %vm294, %v1665, 0
    %v1674 = vsel %vm294, %v1666, 0
    %1676 = vmatpush.xpose.msra.mxu0 0.0
    %1677 = vmatpush.xpose.msra.mxu0 0.0
    %1678 = vmatpush.xpose.msra.mxu0 0.0
    %1679 = vmatpush.xpose.msra.mxu0 0.0
    %1680 = vmatpush.xpose.msra.mxu0 0.0
    %1681 = vmatpush.xpose.msra.mxu0 0.0
    %1682 = vmatpush.xpose.msra.mxu0 0.0
    %1683 = vmatpush.xpose.msra.mxu0 0.0
    %1684 = vmatpush.xpose.msra.mxu0 0.0
    %1685 = vmatpush.xpose.msra.mxu0 0.0
    %1686 = vmatpush.xpose.msra.mxu0 0.0
    %1687 = vmatpush.xpose.msra.mxu0 0.0
    %1688 = vmatpush.xpose.msra.mxu0 0.0
    %1689 = vmatpush.xpose.msra.mxu0 0.0
    %1690 = vmatpush.xpose.msra.mxu0 %v1674
    %1691 = vmatpush.xpose.msra.mxu0 %v1671
    %1692 = vmatmul.f32.gmra.mxu0 %v1668
    %v1693 = vpop.f32.mrf.mxu0
    %v1694 = vadd.f32 0.0, %v1693
    %1695 = vdwg.mxu0
    %1696 = vxpose.xlu0.b32.start [1/16] %v1124, 128
    %1697 = vxpose.xlu0.b32.cont [2/16] %v1238, 128
    %1698 = vxpose.xlu0.b32.cont [3/16] %v1352, 128
    %1699 = vxpose.xlu0.b32.cont [4/16] %v1466, 128
    %1700 = vxpose.xlu0.b32.cont [5/16] %v1580, 128
    %1701 = vxpose.xlu0.b32.cont [6/16] %v1694, 128
    %1702 = vxpose.xlu0.b32.cont [7/16] 0.0, 128
    %1703 = vxpose.xlu0.b32.cont [8/16] 0.0, 128
    %1704 = vxpose.xlu0.b32.cont [9/16] 0.0, 128
    %1705 = vxpose.xlu0.b32.cont [10/16] 0.0, 128
    %1706 = vxpose.xlu0.b32.cont [11/16] 0.0, 128
    %1707 = vxpose.xlu0.b32.cont [12/16] 0.0, 128
    %1708 = vxpose.xlu0.b32.cont [13/16] 0.0, 128
    %1709 = vxpose.xlu0.b32.cont [14/16] 0.0, 128
    %1710 = vxpose.xlu0.b32.cont [15/16] 0.0, 128
    %1711 = vxpose.xlu0.b32.end [16/16] 0.0, 128
    %v1712 = vpop.trf.xlu0
    %v1713 = vpop.trf.xlu0
    %v1714 = vpop.trf.xlu0
    %v1715 = vpop.trf.xlu0
    %v1716 = vpop.trf.xlu0
    %v1717 = vpop.trf.xlu0
    %v1718 = vpop.trf.xlu0
    %v1719 = vpop.trf.xlu0
    %v1720 = vpop.trf.xlu0
    %v1721 = vpop.trf.xlu0
    %v1722 = vpop.trf.xlu0
    %v1723 = vpop.trf.xlu0
    %v1724 = vpop.trf.xlu0
    %v1725 = vpop.trf.xlu0
    %v1726 = vpop.trf.xlu0
    %v1727 = vpop.trf.xlu0
    %v1728 = vld [vmem:[#allocation7] sm:$0xff]
    %v1729 = vld [vmem:[#allocation7 + $0x8] sm:$0xff]
    %v1730 = vld [vmem:[#allocation7 + $0x10] sm:$0xff]
    %v1731 = vld [vmem:[#allocation7 + $0x18] sm:$0xff]
    %v1732 = vld [vmem:[#allocation7 + $0x20] sm:$0xff]
    %v1733 = vld [vmem:[#allocation7 + $0x28] sm:$0xff]
    %v1734 = vld [vmem:[%s4] sm:$0x1]
    %v1736 = vperm.slane %v1734, 0
    %v1739 = vsel %vm95, %v932, 0
    %v1742 = vsel %vm95, %v933, 0
    %v1745 = vsel %vm95, %v1712, 0
    %v1748 = vsel %vm95, %v1713, 0
    %1750 = vmatpush.msra.mxu0 0.0
    %1751 = vmatpush.msra.mxu0 0.0
    %1752 = vmatpush.msra.mxu0 0.0
    %1753 = vmatpush.msra.mxu0 0.0
    %1754 = vmatpush.msra.mxu0 0.0
    %1755 = vmatpush.msra.mxu0 0.0
    %1756 = vmatpush.msra.mxu0 0.0
    %1757 = vmatpush.msra.mxu0 0.0
    %1758 = vmatpush.msra.mxu0 0.0
    %1759 = vmatpush.msra.mxu0 0.0
    %1760 = vmatpush.msra.mxu0 %v1733
    %1761 = vmatpush.msra.mxu0 %v1732
    %1762 = vmatpush.msra.mxu0 %v1731
    %1763 = vmatpush.msra.mxu0 %v1730
    %1764 = vmatpush.msra.mxu0 %v1729
    %1765 = vmatpush.msra.mxu0 %v1728
    %1766 = vmatmul.f32.gmra.mxu0 %v1739
    %v1767 = vpop.f32.mrf.mxu0
    %v1768 = vadd.f32 %v1736, %v1767
    %1769 = vmatmul.f32.gmra.mxu0 %v1742
    %v1770 = vpop.f32.mrf.mxu0
    %v1771 = vadd.f32 %v1736, %v1770
    %1772 = vmatmul.f32.gmra.mxu0 %v1745
    %v1773 = vpop.f32.mrf.mxu0
    %v1774 = vadd.f32 %v1736, %v1773
    %1775 = vmatmul.f32.gmra.mxu0 %v1748
    %v1776 = vpop.f32.mrf.mxu0
    %v1777 = vadd.f32 %v1736, %v1776
    %1778 = vdwg.mxu0
    %v1779 = vmul.f32 %v72, %v1768
    %v1780 = vmul.f32 %v73, %v1771
    %v1781 = vmul.f32 %v75, %v1774
    %v1782 = vmul.f32 %v76, %v1777
    %v1783 = vld [vmem:[%s5] sm:$0xff]
    %v1784 = vld [vmem:[%s5 + $0x8] sm:$0xff]
    %v1785 = vld [vmem:[%s6] sm:$0xff]
    %v1786 = vld [vmem:[%s6 + $0x8] sm:$0xff]
    %v1787 = vsel %vm95, %v1779, 0.0
    %v1788 = vsel %vm95, %v1780, 0.0
    %v1789 = vadd.f32 %v1787, %v1788
    %v1790 = vrot.slane %v1789, 4
    %v1791 = vadd.f32 %v1789, %v1790
    %v1792 = vrot.slane %v1791, 2
    %v1793 = vadd.f32 %v1791, %v1792
    %v1794 = vrot.slane %v1793, 1
    %v1795 = vadd.f32 %v1793, %v1794
    %v1796 = vrcp.pop 16.0
    %v1797 = vmul.f32 16.0, %v1796
    %v1798 = vsub.f32 1.0, %v1797
    %v1799 = vmul.f32 %v1796, %v1798
    %v1800 = vadd.f32 %v1796, %v1799
    %vm1801 = vweird.f32 %v1796
    %v1802 = vsel %vm1801, %v1796, %v1800
    %v1803 = vmul.f32 %v1795, %v1802
    %v1804 = vsub.f32 %v1779, %v1803
    %v1805 = vsub.f32 %v1780, %v1803
    %v1806 = vmul.f32 %v1804, %v1804
    %v1807 = vmul.f32 %v1805, %v1805
    %v1808 = vsel %vm95, %v1806, 0.0
    %v1809 = vsel %vm95, %v1807, 0.0
    %v1810 = vadd.f32 %v1808, %v1809
    %v1811 = vrot.slane %v1810, 4
    %v1812 = vadd.f32 %v1810, %v1811
    %v1813 = vrot.slane %v1812, 2
    %v1814 = vadd.f32 %v1812, %v1813
    %v1815 = vrot.slane %v1814, 1
    %v1816 = vadd.f32 %v1814, %v1815
    %v1817 = vmul.f32 %v1816, %v1802
    %v1818 = vadd.f32 %v1817, 1e-05
    %v1819 = vrsqrt.pop %v1818
    %v1820 = vmul.f32 %v1819, %v1818
    %v1821 = vmul.f32 %v1820, %v1819
    %v1822 = vmul.f32 0.5, %v1821
    %v1823 = vsub.f32 1.5, %v1822
    %v1824 = vmul.f32 %v1819, %v1823
    %vm1825 = vweird.f32 %v1818
    %vm1826 = vweird.f32 %v1819
    %vm1827 = vmor %vm1825, %vm1826
    %v1828 = vsel %vm1827, %v1819, %v1824
    %v1829 = vmul.f32 %v1804, %v1828
    %v1830 = vmul.f32 %v1805, %v1828
    %1832 = vset.pattern.permute.xlu0 0
    %1833 = vperm.xlu0 %1832, %v1783
    %v1834 = vpop.permute.xlu0 %1833
    %1837 = vset.pattern.permute.xlu0 0
    %1838 = vperm.xlu0 %1837, %v1784
    %v1839 = vpop.permute.xlu0 %1838
    %v1841 = vmul.f32 %v1829, %v1834
    %v1842 = vmul.f32 %v1830, %v1839
    %1844 = vset.pattern.permute.xlu0 0
    %1845 = vperm.xlu0 %1844, %v1785
    %v1846 = vpop.permute.xlu0 %1845
    %1849 = vset.pattern.permute.xlu0 0
    %1850 = vperm.xlu0 %1849, %v1786
    %v1851 = vpop.permute.xlu0 %1850
    %v1853 = vadd.f32 %v1841, %v1846
    %v1854 = vadd.f32 %v1842, %v1851
    %1855 = vst.msk [vmem:[#allocation8] sm:$0xff] %vm95, %v1853
    %1856 = vst.msk [vmem:[#allocation8 + $0x8] sm:$0xff] %vm95, %v1854
    %v1857 = vsel %vm95, %v1781, 0.0
    %v1858 = vsel %vm95, %v1782, 0.0
    %v1859 = vadd.f32 %v1857, %v1858
    %v1860 = vrot.slane %v1859, 4
    %v1861 = vadd.f32 %v1859, %v1860
    %v1862 = vrot.slane %v1861, 2
    %v1863 = vadd.f32 %v1861, %v1862
    %v1864 = vrot.slane %v1863, 1
    %v1865 = vadd.f32 %v1863, %v1864
    %v1866 = vmul.f32 %v1865, %v1802
    %v1867 = vsub.f32 %v1781, %v1866
    %v1868 = vsub.f32 %v1782, %v1866
    %v1869 = vmul.f32 %v1867, %v1867
    %v1870 = vmul.f32 %v1868, %v1868
    %v1871 = vsel %vm95, %v1869, 0.0
    %v1872 = vsel %vm95, %v1870, 0.0
    %v1873 = vadd.f32 %v1871, %v1872
    %v1874 = vrot.slane %v1873, 4
    %v1875 = vadd.f32 %v1873, %v1874
    %v1876 = vrot.slane %v1875, 2
    %v1877 = vadd.f32 %v1875, %v1876
    %v1878 = vrot.slane %v1877, 1
    %v1879 = vadd.f32 %v1877, %v1878
    %v1880 = vmul.f32 %v1879, %v1802
    %v1881 = vadd.f32 %v1880, 1e-05
    %v1882 = vrsqrt.pop %v1881
    %v1883 = vmul.f32 %v1882, %v1881
    %v1884 = vmul.f32 %v1883, %v1882
    %v1885 = vmul.f32 0.5, %v1884
    %v1886 = vsub.f32 1.5, %v1885
    %v1887 = vmul.f32 %v1882, %v1886
    %vm1888 = vweird.f32 %v1881
    %vm1889 = vweird.f32 %v1882
    %vm1890 = vmor %vm1888, %vm1889
    %v1891 = vsel %vm1890, %v1882, %v1887
    %v1892 = vmul.f32 %v1867, %v1891
    %v1893 = vmul.f32 %v1868, %v1891
    %v1894 = vmul.f32 %v1892, %v1834
    %v1895 = vmul.f32 %v1893, %v1839
    %v1896 = vadd.f32 %v1894, %v1846
    %v1897 = vadd.f32 %v1895, %v1851
    %s1898 = scalar_lea.vmem [#allocation8], 16
    %1899 = vst.msk [vmem:[%s1898] sm:$0xff] %vm95, %v1896
    %1900 = vst.msk [vmem:[%s1898 + $0x8] sm:$0xff] %vm95, %v1897
    // Predicated region
    $region42: #{tpu_custom_call.1} parent=1 // pred_check
      _
    $region43: #{tpu_custom_call.1} parent=1 // pred_check_branch
      %1902 = sbr.rel (0) target = $region45
    $region44: #{tpu_custom_call.1} parent=1 // pred_region
      %1904 = vsyncadd [#allocation4], 0
      %s1905 = sshll.u32 [#allocation8], 4
      %s1906 = int_to_ptr.vmem [resolvable:$true] %s1905
      %s1907 = sshll.u32 %s7, 4
      %s1908 = int_to_ptr.hbm [resolvable:$true] %s1907
      %1913 = dma.vmem_to_hbm [thread:$0]  %s1906, 512, %s1908, [#allocation4], 128, 128, 8
    $region45: #{tpu_custom_call.1} parent=1 // pred_fallthru
      _
    // Predicated region
    $region46: #{tpu_custom_call.1} parent=1 // pred_check
      _
    $region47: #{tpu_custom_call.1} parent=1 // pred_check_branch
      %1915 = sbr.rel (0) target = $region49
    $region48: #{tpu_custom_call.1} parent=1 // pred_region
      %1917 = dma.done [#allocation4], 512
    $region49: #{tpu_custom_call.1} parent=1 // pred_fallthru
      _
    %1918 = vsyncpa [#allocation3], 1
    %1919 = vsyncpa [#allocation6], 1
    %1920 = vsyncpa [#allocation4], 1

</llo_original>
